<compile_context>
chip_gen: v7x
topology: tpu7x:2x2x1
jax: 0.10.0
libtpu: 0.0.40
codegen_flags: <defaults>
</compile_context>

<pallas_src>
import functools

import jax
import jax.numpy as jnp
from jax.experimental import pallas as pl
from jax.experimental.pallas import tpu as pltpu

_EPS = 1e-5
_SLOPE = 0.1                  # F.leaky_relu negative_slope
_MXU_DTYPE = jnp.bfloat16     # matmul operand dtype (f32 accumulation)
_ACT_DTYPE = jnp.bfloat16     # HBM dtype of patches / y1 / ysc streams


def _leaky(y):
    return jnp.where(y >= 0, y, _SLOPE * y)


# --------------------------- hardware heuristics -----------------------------
def _tpu_generation():
    try:
        kind = jax.devices()[0].device_kind.lower()
    except Exception:
        return 0
    for g in (7, 6, 5, 4):
        if "v%d" % g in kind:
            return g
    return 0


def _vmem_limit_bytes():
    g = _tpu_generation()
    if g in (5, 6):
        return 100 * 1024 * 1024      # 128 MiB physical VMEM parts
    if g == 7:
        return 56 * 1024 * 1024       # 64 MiB physical, leave compiler headroom
    return 48 * 1024 * 1024           # conservative default


def _compiler_params(semantics, vmem_limit):
    return pltpu.CompilerParams(dimension_semantics=(semantics,),
                                vmem_limit_bytes=vmem_limit)


def _pick_tile_rows(m, row_bytes, fixed_bytes, vmem_limit, target, min_grid=2):
    """Row tile: multiple of 8, fits the VMEM budget, >= min_grid grid steps."""
    budget = int(vmem_limit * 0.7) - fixed_bytes
    cap = max(8, budget // max(row_bytes, 1))
    tm = min(target, m, cap)
    if m > 8 and min_grid > 1:
        tm = min(tm, -(-m // min_grid))          # ceil(m / min_grid)
    return max(8, (tm // 8) * 8)


def _row_block(tm, cols, nbuf=2):
    """(tm, cols) row-tile BlockSpec; optional deeper buffering (v5e)."""
    if nbuf > 2:
        try:
            return pl.BlockSpec((tm, cols), lambda i: (i, 0),
                                pipeline_mode=pl.Buffered(nbuf))
        except Exception:                         # API without pipeline_mode
            pass
    return pl.BlockSpec((tm, cols), lambda i: (i, 0))


def _whole(a):
    return pl.BlockSpec(a.shape, lambda i: (0,) * a.ndim)


def _lane_pad(c):
    """Lane-dense output width: round up to 128 unless it >2x the traffic."""
    if c % 128 == 0:
        return c
    cpad = ((c + 127) // 128) * 128
    return cpad if cpad <= 2 * c else c


def _pad_rows(a, rows):
    if a.shape[0] == rows:
        return a
    return jnp.pad(a, ((0, rows - a.shape[0]), (0, 0)))


def _pad_cols(a, cols, fill=0.0):
    if a.shape[-1] == cols:
        return a
    return jnp.pad(a, ((0, 0), (0, cols - a.shape[-1])), constant_values=fill)


# ------------------------------ Pallas kernels --------------------------------
def _stats_kernel(x_ref, sum_ref, sq_ref):
    """Accumulating per-channel sum / sum-of-squares (BN1 batch statistics)."""
    @pl.when(pl.program_id(0) == 0)
    def _init():
        sum_ref[...] = jnp.zeros_like(sum_ref)
        sq_ref[...] = jnp.zeros_like(sq_ref)

    x = x_ref[...]
    sum_ref[...] += jnp.sum(x, axis=0, keepdims=True)
    sq_ref[...] += jnp.sum(x * x, axis=0, keepdims=True)


def _mask_pad_rows(y, m_valid):
    """Zero the rows that only exist because of row padding of the grid."""
    start = pl.program_id(0) * y.shape[0]
    row = jax.lax.broadcasted_iota(jnp.int32, y.shape, 0) + start
    return jnp.where(row < m_valid, y, 0.0)


def _tile_stats(*arrs):
    """Per-tile (sum, sum-of-squares) rows for each array -> (1, 2k, C)."""
    c = arrs[0].shape[-1]
    k = 2 * len(arrs)
    row = jax.lax.broadcasted_iota(jnp.int32, (k, c), 0)
    out = jnp.zeros((k, c), jnp.float32)
    for i, a in enumerate(arrs):
        out += jnp.where(row == 2 * i, jnp.sum(a, axis=0, keepdims=True), 0.0)
        out += jnp.where(row == 2 * i + 1,
                         jnp.sum(a * a, axis=0, keepdims=True), 0.0)
    return out[None]


def _conv1_kernel(p_ref, w1_ref, s1p_ref, b1p_ref, y1_ref, st_ref,
                  *, m_valid, needs_mask):
    """BN1+leaky on raw-x patches, conv1 matmul, fused per-tile BN2 stats."""
    a = _leaky(p_ref[...].astype(jnp.float32) * s1p_ref[...] + b1p_ref[...])
    y = jnp.dot(a.astype(_MXU_DTYPE), w1_ref[...],
                preferred_element_type=jnp.float32)
    y1_ref[...] = y.astype(y1_ref.dtype)
    if needs_mask:
        y = _mask_pad_rows(y, m_valid)
    st_ref[...] = _tile_stats(y)


def _conv1_proj_kernel(p_ref, w1_ref, wsc_ref, s1p_ref, b1p_ref,
                       y1_ref, ysc_ref, st_ref, *, cin, m_valid, needs_mask):
    """conv1 + fused BN1/leaky + 1x1 projection conv + fused BN2/BNsc stats.

    The projection input is the centre tap (dy=dx=1) of the 3x3/pad-1 patch,
    i.e. exactly act1 at the strided pixel -- no separate HBM stream needed.
    """
    a = _leaky(p_ref[...].astype(jnp.float32) * s1p_ref[...] + b1p_ref[...])
    y = jnp.dot(a.astype(_MXU_DTYPE), w1_ref[...],
                preferred_element_type=jnp.float32)
    y1_ref[...] = y.astype(y1_ref.dtype)
    asc = a[:, 4 * cin:5 * cin]
    ysc = jnp.dot(asc.astype(_MXU_DTYPE), wsc_ref[...],
                  preferred_element_type=jnp.float32)
    ysc_ref[...] = ysc.astype(ysc_ref.dtype)
    if needs_mask:
        y = _mask_pad_rows(y, m_valid)
        ysc = _mask_pad_rows(ysc, m_valid)
    st_ref[...] = _tile_stats(y, ysc)


def _conv2_kernel(p_ref, sc_ref, w2_ref, s2p_ref, b2p_ref, ssc_ref, bsc_ref,
                  o_ref, *, identity_shortcut):
    """conv2 + fused BN2/leaky + shortcut BN (or leaky(bn1)) + residual add."""
    a = _leaky(p_ref[...].astype(jnp.float32) * s2p_ref[...] + b2p_ref[...])
    y = jnp.dot(a.astype(_MXU_DTYPE), w2_ref[...],
                preferred_element_type=jnp.float32)
    sc = sc_ref[...].astype(jnp.float32) * ssc_ref[...] + bsc_ref[...]
    if identity_shortcut:                 # shortcut = act1 = leaky(bn1(x))
        sc = _leaky(sc)
    o_ref[...] = (y + sc).astype(o_ref.dtype)


# ------------------------------- helpers --------------------------------------
def _bn_affine(mean, var, gamma, beta):
    """Fold training-mode BN (batch stats, eps=1e-5) into scale/shift."""
    inv = jax.lax.rsqrt(var + _EPS)
    scale = gamma.reshape(1, -1).astype(jnp.float32) * inv
    shift = beta.reshape(1, -1).astype(jnp.float32) - mean * scale
    return scale, shift


def _pad_value(scale, shift):
    """Per-channel raw value the BN affine maps to ~0 (assumes gamma != 0)."""
    safe = jnp.where(scale != 0, scale, 1.0)
    return jnp.where(scale != 0, -shift / safe, 0.0)


def _stats_from_tiles(st, m, idx):
    """(grid, k, C) per-tile sums -> per-channel (mean, biased var)."""
    s = jnp.sum(st[:, idx, :], axis=0, keepdims=True)
    sq = jnp.sum(st[:, idx + 1, :], axis=0, keepdims=True)
    mean = s / m
    # NOTE: E[x^2]-E[x]^2 in f32 with a clamp; fine at activation scales.
    # TODO(synk): shifted / two-pass variance if means dwarf the std.
    var = jnp.maximum(sq / m - mean * mean, 0.0)
    return mean, var


def _channel_stats(x2d, target_rows, vmem_limit):
    """Per-channel (mean, biased var) via a tiled accumulating reduction."""
    m, c = x2d.shape
    row_bytes = 2 * c * x2d.dtype.itemsize
    tm = _pick_tile_rows(m, row_bytes, 0, vmem_limit, target_rows, min_grid=1)
    gn = pl.cdiv(m, tm)
    xp = _pad_rows(x2d, gn * tm)                  # zero rows keep sums exact
    s, sq = pl.pallas_call(
        _stats_kernel,
        grid=(gn,),
        in_specs=[pl.BlockSpec((tm, c), lambda i: (i, 0))],
        out_specs=(pl.BlockSpec((1, c), lambda i: (0, 0)),
                   pl.BlockSpec((1, c), lambda i: (0, 0))),
        out_shape=(jax.ShapeDtypeStruct((1, c), jnp.float32),
                   jax.ShapeDtypeStruct((1, c), jnp.float32)),
        compiler_params=_compiler_params("arbitrary", vmem_limit),
    )(xp)
    mean = s / m
    var = jnp.maximum(sq / m - mean * mean, 0.0)
    return mean, var


def _im2col(x_nhwc, ksize, stride, pad, pad_val, out_dtype):
    """3x3 patch extraction (XLA glue) with a per-channel border fill value."""
    # TODO(synk): in-kernel halo conv would avoid this 9x-duplicated stream.
    n, h, w, c = x_nhwc.shape
    x_nhwc = x_nhwc.astype(out_dtype)
    fill = jnp.broadcast_to(pad_val.reshape(1, 1, 1, c).astype(out_dtype),
                            (n, h + 2 * pad, w + 2 * pad, c))
    xp = jax.lax.dynamic_update_slice(fill, x_nhwc, (0, pad, pad, 0))
    ho = (h + 2 * pad - ksize) // stride + 1
    wo = (w + 2 * pad - ksize) // stride + 1
    cols = []
    for dy in range(ksize):
        for dx in range(ksize):
            cols.append(xp[:, dy:dy + stride * (ho - 1) + 1:stride,
                           dx:dx + stride * (wo - 1) + 1:stride, :])
    patches = jnp.concatenate(cols, axis=-1)
    return patches.reshape(n * ho * wo, ksize * ksize * c), ho, wo


def _w_oihw_to_mat(w_oihw, cols_out):
    """(O, C, kh, kw) -> (kh*kw*C, cols_out) bf16, matching im2col ordering."""
    o, c, kh, kw = w_oihw.shape
    wm = jnp.transpose(w_oihw, (2, 3, 1, 0)).reshape(kh * kw * c, o)
    return _pad_cols(wm, cols_out).astype(_MXU_DTYPE)


# -------------------------------- forward --------------------------------------
def wide_resnet_block_forward(x_nchw, params, *, stride, tile_rows=None):
    """Training-mode (batch-stats) forward of the pre-activation WRN block."""
    n, cin, h, w = x_nchw.shape
    cout = params["conv1_w"].shape[0]
    proj = (stride != 1) or (cin != cout)
    f32 = jnp.float32

    gen = _tpu_generation()
    vmem_limit = _vmem_limit_bytes()
    nbuf = 3 if gen == 5 else 2          # deeper patch buffering on low-BW v5e
    if tile_rows is None:
        tile_rows = 1024 if vmem_limit >= 96 * 1024 * 1024 else 512

    # TODO(synk): drop the NCHW<->NHWC transposes (and emit bf16) if the
    # surrounding model runs NHWC end-to-end.
    x_nhwc = jnp.transpose(x_nchw, (0, 2, 3, 1)).astype(f32)
    m = n * h * w
    x2d = x_nhwc.reshape(m, cin)

    # ---- BN1 batch statistics over raw x (tiled accumulating reduction) ----
    mean1, var1 = _channel_stats(x2d, tile_rows, vmem_limit)
    scale1, shift1 = _bn_affine(mean1, var1, params["bn1_g"], params["bn1_b"])

    # ---- conv1 (+ 1x1 projection), BN1+leaky and BN2/BNsc stats fused ------
    cpad = _lane_pad(cout)
    patches1, ho, wo = _im2col(x_nhwc, 3, stride, 1,
                               _pad_value(scale1, shift1), _ACT_DTYPE)
    m2 = n * ho * wo
    w1m = _w_oihw_to_mat(params["conv1_w"], cpad)
    s1p = jnp.tile(scale1, (1, 9))
    b1p = jnp.tile(shift1, (1, 9))

    # one VMEM-budgeted row tile for both conv grids (>=2 steps for megacore)
    act_b = jnp.dtype(_ACT_DTYPE).itemsize
    row_bytes = (nbuf * 9 * max(cin, cout) * act_b          # patch stream
                 + 2 * cpad * act_b * (3 if proj else 2)    # y1 (+ysc) + sc
                 + 2 * cpad * 4)                            # conv2 f32 output
    fixed = 4 * (9 * max(cin, cout) + cin) * cpad * act_b   # resident weights
    tm = _pick_tile_rows(m2, row_bytes, fixed, vmem_limit, tile_rows)
    gn = pl.cdiv(m2, tm)
    m2p = gn * tm
    needs_mask = (m2p != m2)

    patches1 = _pad_rows(patches1, m2p)
    rows = lambda cols: pl.BlockSpec((tm, cols), lambda i: (i, 0))
    rows_buf = lambda cols: _row_block(tm, cols, nbuf)
    par = _compiler_params("parallel", vmem_limit)

    if proj:
        wscm = _pad_cols(jnp.transpose(params["sc_w"][:, :, 0, 0], (1, 0)),
                         cpad).astype(_MXU_DTYPE)
        y1, ysc, st = pl.pallas_call(
            functools.partial(_conv1_proj_kernel, cin=cin, m_valid=m2,
                              needs_mask=needs_mask),
            grid=(gn,),
            in_specs=[rows_buf(9 * cin), _whole(w1m), _whole(wscm),
                      _whole(s1p), _whole(b1p)],
            out_specs=(rows(cpad), rows(cpad),
                       pl.BlockSpec((1, 4, cpad), lambda i: (i, 0, 0))),
            out_shape=(jax.ShapeDtypeStruct((m2p, cpad), _ACT_DTYPE),
                       jax.ShapeDtypeStruct((m2p, cpad), _ACT_DTYPE),
                       jax.ShapeDtypeStruct((gn, 4, cpad), f32)),
            compiler_params=par,
        )(patches1, w1m, wscm, s1p, b1p)
    else:
        y1, st = pl.pallas_call(
            functools.partial(_conv1_kernel, m_valid=m2,
                              needs_mask=needs_mask),
            grid=(gn,),
            in_specs=[rows_buf(9 * cin), _whole(w1m),
                      _whole(s1p), _whole(b1p)],
            out_specs=(rows(cpad),
                       pl.BlockSpec((1, 2, cpad), lambda i: (i, 0, 0))),
            out_shape=(jax.ShapeDtypeStruct((m2p, cpad), _ACT_DTYPE),
                       jax.ShapeDtypeStruct((gn, 2, cpad), f32)),
            compiler_params=par,
        )(patches1, w1m, s1p, b1p)

    st = st[:, :, :cout]                 # drop lane padding from fused stats
    mean2, var2 = _stats_from_tiles(st, m2, 0)
    scale2, shift2 = _bn_affine(mean2, var2, params["bn2_g"], params["bn2_b"])

    if proj:
        mean_s, var_s = _stats_from_tiles(st, m2, 2)
        sc_scale, sc_shift = _bn_affine(mean_s, var_s,
                                        params["bnsc_g"], params["bnsc_b"])
        sc_src = ysc                     # already (m2p, cpad) and lane-dense
        ssc = _pad_cols(sc_scale, cpad, 1.0)
        bsc = _pad_cols(sc_shift, cpad, 0.0)
    else:
        # shortcut = act1 = leaky(bn1(x)): stream raw x (bf16), fold BN1 in
        sc_src = _pad_cols(_pad_rows(x2d.astype(_ACT_DTYPE), m2p), cpad)
        ssc = _pad_cols(scale1, cpad, 1.0)
        bsc = _pad_cols(shift1, cpad, 0.0)

    # ---- conv2 + BN2/leaky + shortcut affine + residual add, all fused ----
    y1_img = y1[:m2, :cout].reshape(n, ho, wo, cout)
    patches2, _, _ = _im2col(y1_img, 3, 1, 1,
                             _pad_value(scale2, shift2), _ACT_DTYPE)
    patches2 = _pad_rows(patches2, m2p)
    w2m = _w_oihw_to_mat(params["conv2_w"], cpad)
    s2p = jnp.tile(scale2, (1, 9))
    b2p = jnp.tile(shift2, (1, 9))

    out2d = pl.pallas_call(
        functools.partial(_conv2_kernel, identity_shortcut=not proj),
        grid=(gn,),
        in_specs=[rows_buf(9 * cout), rows(cpad), _whole(w2m),
                  _whole(s2p), _whole(b2p), _whole(ssc), _whole(bsc)],
        out_specs=rows(cpad),
        out_shape=jax.ShapeDtypeStruct((m2p, cpad), f32),
        compiler_params=par,
    )(patches2, sc_src, w2m, s2p, b2p, ssc, bsc)

    out = out2d[:m2, :cout].reshape(n, ho, wo, cout)
    return jnp.transpose(out, (0, 3, 1, 2))       # NCHW to match the module


# --------------------- pure-JAX references (NCHW) -----------------------------
def _reference(x, params, stride, match_kernel=False):
    """XLA reference.  match_kernel=True mirrors the kernel's bf16 streams
    (bf16 conv operands and bf16-stored intermediates) for a tight check."""
    f32 = jnp.float32

    def q(t):                            # bf16 storage round-trip
        return t.astype(jnp.bfloat16).astype(f32) if match_kernel else t

    def bn_stats(t):
        mu = jnp.mean(t, axis=(0, 2, 3), keepdims=True)
        var = jnp.mean(jnp.square(t - mu), axis=(0, 2, 3), keepdims=True)
        return mu, var

    def bn_apply(t, mu, var, g, b):
        return ((t - mu) * jax.lax.rsqrt(var + _EPS) * g.reshape(1, -1, 1, 1)
                + b.reshape(1, -1, 1, 1))

    conv_dt = jnp.bfloat16 if match_kernel else f32
    prec = (jax.lax.Precision.DEFAULT if match_kernel
            else jax.lax.Precision.HIGHEST)

    def conv(t, wt, s, pad):
        return jax.lax.conv_general_dilated(
            t.astype(conv_dt), wt.astype(conv_dt), (s, s),
            ((pad, pad), (pad, pad)),
            dimension_numbers=("NCHW", "OIHW", "NCHW"),
            preferred_element_type=f32, precision=prec)

    cin, cout = x.shape[1], params["conv1_w"].shape[0]
    mu1, v1 = bn_stats(x)                # stats from f32 x, like the kernel
    act1 = _leaky(bn_apply(q(x), mu1, v1, params["bn1_g"], params["bn1_b"]))
    y1 = conv(act1, params["conv1_w"], stride, 1)
    if stride != 1 or cin != cout:
        ysc = conv(act1[:, :, ::stride, ::stride], params["sc_w"], 1, 0)
        mus, vs = bn_stats(ysc)
        sc = bn_apply(q(ysc), mus, vs, params["bnsc_g"], params["bnsc_b"])
    else:
        sc = act1
    mu2, v2 = bn_stats(y1)
    act2 = _leaky(bn_apply(q(y1), mu2, v2, params["bn2_g"], params["bn2_b"]))
    return conv(act2, params["conv2_w"], 1, 1) + sc


# ----------------------------------- test --------------------------------------
def _run_case(key, *, n, cin, cout, h, w, stride, tile_rows=None):
    ks = jax.random.split(key, 10)
    x = jax.random.normal(ks[0], (n, cin, h, w), jnp.float32)
    params = {
        "bn1_g": 1.0 + 0.1 * jax.random.normal(ks[1], (cin,), jnp.float32),
        "bn1_b": 0.1 * jax.random.normal(ks[2], (cin,), jnp.float32),
        "conv1_w": 0.3 * jax.random.normal(ks[3], (cout, cin, 3, 3),
                                           jnp.float32),
        "bn2_g": 1.0 + 0.1 * jax.random.normal(ks[4], (cout,), jnp.float32),
        "bn2_b": 0.1 * jax.random.normal(ks[5], (cout,), jnp.float32),
        "conv2_w": 0.3 * jax.random.normal(ks[6], (cout, cout, 3, 3),
                                           jnp.float32),
    }
    if stride != 1 or cin != cout:
        params["sc_w"] = 0.3 * jax.random.normal(ks[7], (cout, cin, 1, 1),
                                                 jnp.float32)
        params["bnsc_g"] = 1.0 + 0.1 * jax.random.normal(ks[8], (cout,),
                                                         jnp.float32)
        params["bnsc_b"] = 0.1 * jax.random.normal(ks[9], (cout,), jnp.float32)

    fwd = jax.jit(functools.partial(wide_resnet_block_forward,
                                    stride=stride, tile_rows=tile_rows))
    out = jax.block_until_ready(fwd(x, params))

    ho = (h - 1) // stride + 1
    wo = (w - 1) // stride + 1
    assert out.shape == (n, cout, ho, wo), out.shape

    # Tight check vs a reference mirroring the kernel's bf16 streams.
    ref_m = jax.jit(functools.partial(_reference, stride=stride,
                                      match_kernel=True))(x, params)
    err_m = float(jnp.max(jnp.abs(out - ref_m)))
    assert err_m < 3e-2, f"matched-arithmetic max err {err_m}"

    # Loose sanity check vs the full-f32 reference (bf16 operand rounding).
    ref_f = jax.jit(functools.partial(_reference, stride=stride,
                                      match_kernel=False))(x, params)
    err_f = float(jnp.max(jnp.abs(out - ref_f)))
    tol_f = 3e-2 + 2e-2 * float(jnp.max(jnp.abs(ref_f)))
    assert err_f < tol_f, f"f32-reference max err {err_f} (tol {tol_f})"


if __name__ == "__main__":
    keys = jax.random.split(jax.random.PRNGKey(0), 4)
    # projection / identity paths with multi-step pipelined grids
    _run_case(keys[0], n=2, cin=4, cout=8, h=16, w=16, stride=2, tile_rows=64)
    _run_case(keys[1], n=2, cin=8, cout=8, h=16, w=16, stride=1, tile_rows=64)
    # lane-padded outputs (cout -> 128) and padded / masked row grids
    _run_case(keys[2], n=2, cin=8, cout=64, h=9, w=9, stride=2)
    _run_case(keys[3], n=2, cin=64, cout=64, h=8, w=8, stride=1)
    print("KERNEL_OK")
</pallas_src>

<mosaic_0001>
module attributes {stable_mosaic.version = 11 : i64} {
  func.func @_stats_kernel(%arg0: i32, %arg1: memref<64x4xf32, #tpu.memory_space<vmem>>, %arg2: memref<1x4xf32, #tpu.memory_space<vmem>>, %arg3: memref<1x4xf32, #tpu.memory_space<vmem>>) attributes {dimension_semantics = [#tpu.dimension_semantics<arbitrary>], iteration_bounds = array<i64: 8>, scalar_prefetch = 0 : i64, scratch_operands = 0 : i64, tpu.core_type = #tpu.core_type<tc>, window_params = [{transform_indices = @transform_0, window_bounds = array<i64: 64, 4>}, {pipeline_mode = #tpu.pipeline_mode<synchronous>, transform_indices = @transform_1, window_bounds = array<i64: 1, 4>}, {pipeline_mode = #tpu.pipeline_mode<synchronous>, transform_indices = @transform_2, window_bounds = array<i64: 1, 4>}]} {
    %c0_i32 = arith.constant 0 : i32
    %0 = arith.cmpi eq, %arg0, %c0_i32 : i32
    %1 = arith.extui %0 : i1 to i32
    %c0_i32_0 = arith.constant 0 : i32
    %2 = arith.cmpi ne, %1, %c0_i32_0 : i32
    scf.if %2 {
      %cst_11 = arith.constant 0.000000e+00 : f32
      %15 = vector.broadcast %cst_11 : f32 to vector<1x4xf32>
      %c0_12 = arith.constant 0 : index
      %c0_13 = arith.constant 0 : index
      %16 = vector.load %arg2[%c0_12, %c0_13] : memref<1x4xf32, #tpu.memory_space<vmem>>, vector<1x4xf32>
      tpu.vector_store %arg2[%c0_12, %c0_13], %15 {strides = array<i32>} : memref<1x4xf32, #tpu.memory_space<vmem>>, vector<1x4xf32>,
      %cst_14 = arith.constant 0.000000e+00 : f32
      %17 = vector.broadcast %cst_14 : f32 to vector<1x4xf32>
      %c0_15 = arith.constant 0 : index
      %c0_16 = arith.constant 0 : index
      %18 = vector.load %arg3[%c0_15, %c0_16] : memref<1x4xf32, #tpu.memory_space<vmem>>, vector<1x4xf32>
      tpu.vector_store %arg3[%c0_15, %c0_16], %17 {strides = array<i32>} : memref<1x4xf32, #tpu.memory_space<vmem>>, vector<1x4xf32>,
    } else {
    }
    %c0 = arith.constant 0 : index
    %c0_1 = arith.constant 0 : index
    %3 = vector.load %arg1[%c0, %c0_1] : memref<64x4xf32, #tpu.memory_space<vmem>>, vector<64x4xf32>
    %c0_2 = arith.constant 0 : index
    %c0_3 = arith.constant 0 : index
    %4 = vector.load %arg2[%c0_2, %c0_3] : memref<1x4xf32, #tpu.memory_space<vmem>>, vector<1x4xf32>
    %cst = arith.constant dense<0.000000e+00> : vector<4xf32>
    %5 = vector.multi_reduction <add>, %3, %cst [0] : vector<64x4xf32> to vector<4xf32>
    %6 = vector.shape_cast %5 : vector<4xf32> to vector<1x4xf32>
    %7 = arith.addf %4, %6 : vector<1x4xf32>
    %c0_4 = arith.constant 0 : index
    %c0_5 = arith.constant 0 : index
    %8 = vector.load %arg2[%c0_4, %c0_5] : memref<1x4xf32, #tpu.memory_space<vmem>>, vector<1x4xf32>
    tpu.vector_store %arg2[%c0_4, %c0_5], %7 {strides = array<i32>} : memref<1x4xf32, #tpu.memory_space<vmem>>, vector<1x4xf32>,
    %c0_6 = arith.constant 0 : index
    %c0_7 = arith.constant 0 : index
    %9 = vector.load %arg3[%c0_6, %c0_7] : memref<1x4xf32, #tpu.memory_space<vmem>>, vector<1x4xf32>
    %10 = arith.mulf %3, %3 : vector<64x4xf32>
    %cst_8 = arith.constant dense<0.000000e+00> : vector<4xf32>
    %11 = vector.multi_reduction <add>, %10, %cst_8 [0] : vector<64x4xf32> to vector<4xf32>
    %12 = vector.shape_cast %11 : vector<4xf32> to vector<1x4xf32>
    %13 = arith.addf %9, %12 : vector<1x4xf32>
    %c0_9 = arith.constant 0 : index
    %c0_10 = arith.constant 0 : index
    %14 = vector.load %arg3[%c0_9, %c0_10] : memref<1x4xf32, #tpu.memory_space<vmem>>, vector<1x4xf32>
    tpu.vector_store %arg3[%c0_9, %c0_10], %13 {strides = array<i32>} : memref<1x4xf32, #tpu.memory_space<vmem>>, vector<1x4xf32>,
    return
  }
  func.func @transform_0(%arg0: i32) -> (i32, i32) {
    %c0_i32 = arith.constant 0 : i32
    %c0_i32_0 = arith.constant 0 : i32
    return %arg0, %c0_i32 : i32, i32
  }
  func.func @transform_1(%arg0: i32) -> (i32, i32) {
    %c0_i32 = arith.constant 0 : i32
    %c0_i32_0 = arith.constant 0 : i32
    %c0_i32_1 = arith.constant 0 : i32
    return %c0_i32, %c0_i32_0 : i32, i32
  }
  func.func @transform_2(%arg0: i32) -> (i32, i32) {
    %c0_i32 = arith.constant 0 : i32
    %c0_i32_0 = arith.constant 0 : i32
    %c0_i32_1 = arith.constant 0 : i32
    return %c0_i32, %c0_i32_0 : i32, i32
  }
}

module attributes {stable_mosaic.version = 11 : i64} {
  func.func @_conv1_proj_kernel(%arg0: i32, %arg1: memref<64x36xbf16, #tpu.memory_space<vmem>>, %arg2: memref<36x8xbf16, #tpu.memory_space<vmem>>, %arg3: memref<4x8xbf16, #tpu.memory_space<vmem>>, %arg4: memref<1x36xf32, #tpu.memory_space<vmem>>, %arg5: memref<1x36xf32, #tpu.memory_space<vmem>>, %arg6: memref<64x8xbf16, #tpu.memory_space<vmem>>, %arg7: memref<64x8xbf16, #tpu.memory_space<vmem>>, %arg8: memref<1x4x8xf32, #tpu.memory_space<vmem>>) attributes {dimension_semantics = [#tpu.dimension_semantics<parallel>], iteration_bounds = array<i64: 2>, scalar_prefetch = 0 : i64, scratch_operands = 0 : i64, tpu.core_type = #tpu.core_type<tc>, window_params = [{transform_indices = @transform_0, window_bounds = array<i64: 64, 36>}, {pipeline_mode = #tpu.pipeline_mode<synchronous>, transform_indices = @transform_1, window_bounds = array<i64: 36, 8>}, {pipeline_mode = #tpu.pipeline_mode<synchronous>, transform_indices = @transform_2, window_bounds = array<i64: 4, 8>}, {pipeline_mode = #tpu.pipeline_mode<synchronous>, transform_indices = @transform_3, window_bounds = array<i64: 1, 36>}, {pipeline_mode = #tpu.pipeline_mode<synchronous>, transform_indices = @transform_4, window_bounds = array<i64: 1, 36>}, {transform_indices = @transform_5, window_bounds = array<i64: 64, 8>}, {transform_indices = @transform_6, window_bounds = array<i64: 64, 8>}, {transform_indices = @transform_7, window_bounds = array<i64: 1, 4, 8>}]} {
    %c0 = arith.constant 0 : index
    %c0_0 = arith.constant 0 : index
    %0 = vector.load %arg1[%c0, %c0_0] : memref<64x36xbf16, #tpu.memory_space<vmem>>, vector<64x36xbf16>
    %1 = arith.extf %0 : vector<64x36xbf16> to vector<64x36xf32>
    %c0_1 = arith.constant 0 : index
    %c0_2 = arith.constant 0 : index
    %2 = vector.load %arg4[%c0_1, %c0_2] : memref<1x36xf32, #tpu.memory_space<vmem>>, vector<1x36xf32>
    %3 = vector.broadcast %2 : vector<1x36xf32> to vector<64x36xf32>
    %4 = arith.mulf %1, %3 : vector<64x36xf32>
    %c0_3 = arith.constant 0 : index
    %c0_4 = arith.constant 0 : index
    %5 = vector.load %arg5[%c0_3, %c0_4] : memref<1x36xf32, #tpu.memory_space<vmem>>, vector<1x36xf32>
    %6 = vector.broadcast %5 : vector<1x36xf32> to vector<64x36xf32>
    %7 = arith.addf %4, %6 : vector<64x36xf32>
    %cst = arith.constant 0.000000e+00 : f32
    %8 = vector.broadcast %cst : f32 to vector<64x36xf32>
    %9 = arith.cmpf oge, %7, %8 : vector<64x36xf32>
    %cst_5 = arith.constant 1.000000e-01 : f32
    %10 = vector.broadcast %cst_5 : f32 to vector<64x36xf32>
    %11 = arith.mulf %10, %7 : vector<64x36xf32>
    %12 = arith.select %9, %7, %11 : vector<64x36xi1>, vector<64x36xf32>
    %13 = arith.truncf %12 : vector<64x36xf32> to vector<64x36xbf16>
    %c0_6 = arith.constant 0 : index
    %c0_7 = arith.constant 0 : index
    %14 = vector.load %arg2[%c0_6, %c0_7] : memref<36x8xbf16, #tpu.memory_space<vmem>>, vector<36x8xbf16>
    %cst_8 = arith.constant dense<0.000000e+00> : vector<64x8xf32>
    %15 = tpu.matmul %13, %14, %cst_8 {dimension_numbers = #tpu.dot_dimension_numbers<[1], [0], [0], [1], [0, 0, 1, 1], [], []>} : vector<64x36xbf16>, vector<36x8xbf16>, vector<64x8xf32> -> vector<64x8xf32>
    %16 = arith.truncf %15 : vector<64x8xf32> to vector<64x8xbf16>
    %c0_9 = arith.constant 0 : index
    %c0_10 = arith.constant 0 : index
    %17 = vector.load %arg6[%c0_9, %c0_10] : memref<64x8xbf16, #tpu.memory_space<vmem>>, vector<64x8xbf16>
    tpu.vector_store %arg6[%c0_9, %c0_10], %16 {strides = array<i32>} : memref<64x8xbf16, #tpu.memory_space<vmem>>, vector<64x8xbf16>,
    %18 = vector.extract_strided_slice %12 {offsets = [0, 16], sizes = [64, 4], strides = [1, 1]} : vector<64x36xf32> to vector<64x4xf32>
    %19 = arith.truncf %18 : vector<64x4xf32> to vector<64x4xbf16>
    %c0_11 = arith.constant 0 : index
    %c0_12 = arith.constant 0 : index
    %20 = vector.load %arg3[%c0_11, %c0_12] : memref<4x8xbf16, #tpu.memory_space<vmem>>, vector<4x8xbf16>
    %cst_13 = arith.constant dense<0.000000e+00> : vector<64x8xf32>
    %21 = tpu.matmul %19, %20, %cst_13 {dimension_numbers = #tpu.dot_dimension_numbers<[1], [0], [0], [1], [0, 0, 1, 1], [], []>} : vector<64x4xbf16>, vector<4x8xbf16>, vector<64x8xf32> -> vector<64x8xf32>
    %22 = arith.truncf %21 : vector<64x8xf32> to vector<64x8xbf16>
    %c0_14 = arith.constant 0 : index
    %c0_15 = arith.constant 0 : index
    %23 = vector.load %arg7[%c0_14, %c0_15] : memref<64x8xbf16, #tpu.memory_space<vmem>>, vector<64x8xbf16>
    tpu.vector_store %arg7[%c0_14, %c0_15], %22 {strides = array<i32>} : memref<64x8xbf16, #tpu.memory_space<vmem>>, vector<64x8xbf16>,
    %24 = tpu.iota {dimensions = array<i32: 0>} : vector<4x8xi32>
    %cst_16 = arith.constant 0.000000e+00 : f32
    %25 = vector.broadcast %cst_16 : f32 to vector<4x8xf32>
    %c0_i32 = arith.constant 0 : i32
    %26 = vector.broadcast %c0_i32 : i32 to vector<4x8xi32>
    %27 = arith.cmpi eq, %24, %26 : vector<4x8xi32>
    %cst_17 = arith.constant dense<0.000000e+00> : vector<8xf32>
    %28 = vector.multi_reduction <add>, %15, %cst_17 [0] : vector<64x8xf32> to vector<8xf32>
    %29 = vector.shape_cast %28 : vector<8xf32> to vector<1x8xf32>
    %cst_18 = arith.constant 0.000000e+00 : f32
    %30 = vector.shape_cast %29 : vector<1x8xf32> to vector<1x8xf32>
    %31 = vector.broadcast %30 : vector<1x8xf32> to vector<4x8xf32>
    %32 = vector.broadcast %cst_18 : f32 to vector<4x8xf32>
    %33 = arith.select %27, %31, %32 : vector<4x8xi1>, vector<4x8xf32>
    %34 = arith.addf %25, %33 : vector<4x8xf32>
    %c1_i32 = arith.constant 1 : i32
    %35 = vector.broadcast %c1_i32 : i32 to vector<4x8xi32>
    %36 = arith.cmpi eq, %24, %35 : vector<4x8xi32>
    %37 = arith.mulf %15, %15 : vector<64x8xf32>
    %cst_19 = arith.constant dense<0.000000e+00> : vector<8xf32>
    %38 = vector.multi_reduction <add>, %37, %cst_19 [0] : vector<64x8xf32> to vector<8xf32>
    %39 = vector.shape_cast %38 : vector<8xf32> to vector<1x8xf32>
    %cst_20 = arith.constant 0.000000e+00 : f32
    %40 = vector.shape_cast %39 : vector<1x8xf32> to vector<1x8xf32>
    %41 = vector.broadcast %40 : vector<1x8xf32> to vector<4x8xf32>
    %42 = vector.broadcast %cst_20 : f32 to vector<4x8xf32>
    %43 = arith.select %36, %41, %42 : vector<4x8xi1>, vector<4x8xf32>
    %44 = arith.addf %34, %43 : vector<4x8xf32>
    %c2_i32 = arith.constant 2 : i32
    %45 = vector.broadcast %c2_i32 : i32 to vector<4x8xi32>
    %46 = arith.cmpi eq, %24, %45 : vector<4x8xi32>
    %cst_21 = arith.constant dense<0.000000e+00> : vector<8xf32>
    %47 = vector.multi_reduction <add>, %21, %cst_21 [0] : vector<64x8xf32> to vector<8xf32>
    %48 = vector.shape_cast %47 : vector<8xf32> to vector<1x8xf32>
    %cst_22 = arith.constant 0.000000e+00 : f32
    %49 = vector.shape_cast %48 : vector<1x8xf32> to vector<1x8xf32>
    %50 = vector.broadcast %49 : vector<1x8xf32> to vector<4x8xf32>
    %51 = vector.broadcast %cst_22 : f32 to vector<4x8xf32>
    %52 = arith.select %46, %50, %51 : vector<4x8xi1>, vector<4x8xf32>
    %53 = arith.addf %44, %52 : vector<4x8xf32>
    %c3_i32 = arith.constant 3 : i32
    %54 = vector.broadcast %c3_i32 : i32 to vector<4x8xi32>
    %55 = arith.cmpi eq, %24, %54 : vector<4x8xi32>
    %56 = arith.mulf %21, %21 : vector<64x8xf32>
    %cst_23 = arith.constant dense<0.000000e+00> : vector<8xf32>
    %57 = vector.multi_reduction <add>, %56, %cst_23 [0] : vector<64x8xf32> to vector<8xf32>
    %58 = vector.shape_cast %57 : vector<8xf32> to vector<1x8xf32>
    %cst_24 = arith.constant 0.000000e+00 : f32
    %59 = vector.shape_cast %58 : vector<1x8xf32> to vector<1x8xf32>
    %60 = vector.broadcast %59 : vector<1x8xf32> to vector<4x8xf32>
    %61 = vector.broadcast %cst_24 : f32 to vector<4x8xf32>
    %62 = arith.select %55, %60, %61 : vector<4x8xi1>, vector<4x8xf32>
    %63 = arith.addf %53, %62 : vector<4x8xf32>
    %64 = vector.shape_cast %63 : vector<4x8xf32> to vector<1x4x8xf32>
    %c0_25 = arith.constant 0 : index
    %c0_26 = arith.constant 0 : index
    %c0_27 = arith.constant 0 : index
    %65 = vector.load %arg8[%c0_25, %c0_26, %c0_27] : memref<1x4x8xf32, #tpu.memory_space<vmem>>, vector<1x4x8xf32>
    tpu.vector_store %arg8[%c0_25, %c0_26, %c0_27], %64 {strides = array<i32>} : memref<1x4x8xf32, #tpu.memory_space<vmem>>, vector<1x4x8xf32>,
    return
  }
  func.func @transform_0(%arg0: i32) -> (i32, i32) {
    %c0_i32 = arith.constant 0 : i32
    %c0_i32_0 = arith.constant 0 : i32
    return %arg0, %c0_i32 : i32, i32
  }
  func.func @transform_1(%arg0: i32) -> (i32, i32) {
    %c0_i32 = arith.constant 0 : i32
    %c0_i32_0 = arith.constant 0 : i32
    %c0_i32_1 = arith.constant 0 : i32
    return %c0_i32, %c0_i32_0 : i32, i32
  }
  func.func @transform_2(%arg0: i32) -> (i32, i32) {
    %c0_i32 = arith.constant 0 : i32
    %c0_i32_0 = arith.constant 0 : i32
    %c0_i32_1 = arith.constant 0 : i32
    return %c0_i32, %c0_i32_0 : i32, i32
  }
  func.func @transform_3(%arg0: i32) -> (i32, i32) {
    %c0_i32 = arith.constant 0 : i32
    %c0_i32_0 = arith.constant 0 : i32
    %c0_i32_1 = arith.constant 0 : i32
    return %c0_i32, %c0_i32_0 : i32, i32
  }
  func.func @transform_4(%arg0: i32) -> (i32, i32) {
    %c0_i32 = arith.constant 0 : i32
    %c0_i32_0 = arith.constant 0 : i32
    %c0_i32_1 = arith.constant 0 : i32
    return %c0_i32, %c0_i32_0 : i32, i32
  }
  func.func @transform_5(%arg0: i32) -> (i32, i32) {
    %c0_i32 = arith.constant 0 : i32
    %c0_i32_0 = arith.constant 0 : i32
    return %arg0, %c0_i32 : i32, i32
  }
  func.func @transform_6(%arg0: i32) -> (i32, i32) {
    %c0_i32 = arith.constant 0 : i32
    %c0_i32_0 = arith.constant 0 : i32
    return %arg0, %c0_i32 : i32, i32
  }
  func.func @transform_7(%arg0: i32) -> (i32, i32, i32) {
    %c0_i32 = arith.constant 0 : i32
    %c0_i32_0 = arith.constant 0 : i32
    %c0_i32_1 = arith.constant 0 : i32
    return %arg0, %c0_i32, %c0_i32_0 : i32, i32, i32
  }
}

module attributes {stable_mosaic.version = 11 : i64} {
  func.func @_conv2_kernel(%arg0: i32, %arg1: memref<64x72xbf16, #tpu.memory_space<vmem>>, %arg2: memref<64x8xbf16, #tpu.memory_space<vmem>>, %arg3: memref<72x8xbf16, #tpu.memory_space<vmem>>, %arg4: memref<1x72xf32, #tpu.memory_space<vmem>>, %arg5: memref<1x72xf32, #tpu.memory_space<vmem>>, %arg6: memref<1x8xf32, #tpu.memory_space<vmem>>, %arg7: memref<1x8xf32, #tpu.memory_space<vmem>>, %arg8: memref<64x8xf32, #tpu.memory_space<vmem>>) attributes {dimension_semantics = [#tpu.dimension_semantics<parallel>], iteration_bounds = array<i64: 2>, scalar_prefetch = 0 : i64, scratch_operands = 0 : i64, tpu.core_type = #tpu.core_type<tc>, window_params = [{transform_indices = @transform_0, window_bounds = array<i64: 64, 72>}, {transform_indices = @transform_1, window_bounds = array<i64: 64, 8>}, {pipeline_mode = #tpu.pipeline_mode<synchronous>, transform_indices = @transform_2, window_bounds = array<i64: 72, 8>}, {pipeline_mode = #tpu.pipeline_mode<synchronous>, transform_indices = @transform_3, window_bounds = array<i64: 1, 72>}, {pipeline_mode = #tpu.pipeline_mode<synchronous>, transform_indices = @transform_4, window_bounds = array<i64: 1, 72>}, {pipeline_mode = #tpu.pipeline_mode<synchronous>, transform_indices = @transform_5, window_bounds = array<i64: 1, 8>}, {pipeline_mode = #tpu.pipeline_mode<synchronous>, transform_indices = @transform_6, window_bounds = array<i64: 1, 8>}, {transform_indices = @transform_7, window_bounds = array<i64: 64, 8>}]} {
    %c0 = arith.constant 0 : index
    %c0_0 = arith.constant 0 : index
    %0 = vector.load %arg1[%c0, %c0_0] : memref<64x72xbf16, #tpu.memory_space<vmem>>, vector<64x72xbf16>
    %1 = arith.extf %0 : vector<64x72xbf16> to vector<64x72xf32>
    %c0_1 = arith.constant 0 : index
    %c0_2 = arith.constant 0 : index
    %2 = vector.load %arg4[%c0_1, %c0_2] : memref<1x72xf32, #tpu.memory_space<vmem>>, vector<1x72xf32>
    %3 = vector.broadcast %2 : vector<1x72xf32> to vector<64x72xf32>
    %4 = arith.mulf %1, %3 : vector<64x72xf32>
    %c0_3 = arith.constant 0 : index
    %c0_4 = arith.constant 0 : index
    %5 = vector.load %arg5[%c0_3, %c0_4] : memref<1x72xf32, #tpu.memory_space<vmem>>, vector<1x72xf32>
    %6 = vector.broadcast %5 : vector<1x72xf32> to vector<64x72xf32>
    %7 = arith.addf %4, %6 : vector<64x72xf32>
    %cst = arith.constant 0.000000e+00 : f32
    %8 = vector.broadcast %cst : f32 to vector<64x72xf32>
    %9 = arith.cmpf oge, %7, %8 : vector<64x72xf32>
    %cst_5 = arith.constant 1.000000e-01 : f32
    %10 = vector.broadcast %cst_5 : f32 to vector<64x72xf32>
    %11 = arith.mulf %10, %7 : vector<64x72xf32>
    %12 = arith.select %9, %7, %11 : vector<64x72xi1>, vector<64x72xf32>
    %13 = arith.truncf %12 : vector<64x72xf32> to vector<64x72xbf16>
    %c0_6 = arith.constant 0 : index
    %c0_7 = arith.constant 0 : index
    %14 = vector.load %arg3[%c0_6, %c0_7] : memref<72x8xbf16, #tpu.memory_space<vmem>>, vector<72x8xbf16>
    %cst_8 = arith.constant dense<0.000000e+00> : vector<64x8xf32>
    %15 = tpu.matmul %13, %14, %cst_8 {dimension_numbers = #tpu.dot_dimension_numbers<[1], [0], [0], [1], [0, 0, 1, 1], [], []>} : vector<64x72xbf16>, vector<72x8xbf16>, vector<64x8xf32> -> vector<64x8xf32>
    %c0_9 = arith.constant 0 : index
    %c0_10 = arith.constant 0 : index
    %16 = vector.load %arg2[%c0_9, %c0_10] : memref<64x8xbf16, #tpu.memory_space<vmem>>, vector<64x8xbf16>
    %17 = arith.extf %16 : vector<64x8xbf16> to vector<64x8xf32>
    %c0_11 = arith.constant 0 : index
    %c0_12 = arith.constant 0 : index
    %18 = vector.load %arg6[%c0_11, %c0_12] : memref<1x8xf32, #tpu.memory_space<vmem>>, vector<1x8xf32>
    %19 = vector.broadcast %18 : vector<1x8xf32> to vector<64x8xf32>
    %20 = arith.mulf %17, %19 : vector<64x8xf32>
    %c0_13 = arith.constant 0 : index
    %c0_14 = arith.constant 0 : index
    %21 = vector.load %arg7[%c0_13, %c0_14] : memref<1x8xf32, #tpu.memory_space<vmem>>, vector<1x8xf32>
    %22 = vector.broadcast %21 : vector<1x8xf32> to vector<64x8xf32>
    %23 = arith.addf %20, %22 : vector<64x8xf32>
    %24 = arith.addf %15, %23 : vector<64x8xf32>
    %c0_15 = arith.constant 0 : index
    %c0_16 = arith.constant 0 : index
    %25 = vector.load %arg8[%c0_15, %c0_16] : memref<64x8xf32, #tpu.memory_space<vmem>>, vector<64x8xf32>
    tpu.vector_store %arg8[%c0_15, %c0_16], %24 {strides = array<i32>} : memref<64x8xf32, #tpu.memory_space<vmem>>, vector<64x8xf32>,
    return
  }
  func.func @transform_0(%arg0: i32) -> (i32, i32) {
    %c0_i32 = arith.constant 0 : i32
    %c0_i32_0 = arith.constant 0 : i32
    return %arg0, %c0_i32 : i32, i32
  }
  func.func @transform_1(%arg0: i32) -> (i32, i32) {
    %c0_i32 = arith.constant 0 : i32
    %c0_i32_0 = arith.constant 0 : i32
    return %arg0, %c0_i32 : i32, i32
  }
  func.func @transform_2(%arg0: i32) -> (i32, i32) {
    %c0_i32 = arith.constant 0 : i32
    %c0_i32_0 = arith.constant 0 : i32
    %c0_i32_1 = arith.constant 0 : i32
    return %c0_i32, %c0_i32_0 : i32, i32
  }
  func.func @transform_3(%arg0: i32) -> (i32, i32) {
    %c0_i32 = arith.constant 0 : i32
    %c0_i32_0 = arith.constant 0 : i32
    %c0_i32_1 = arith.constant 0 : i32
    return %c0_i32, %c0_i32_0 : i32, i32
  }
  func.func @transform_4(%arg0: i32) -> (i32, i32) {
    %c0_i32 = arith.constant 0 : i32
    %c0_i32_0 = arith.constant 0 : i32
    %c0_i32_1 = arith.constant 0 : i32
    return %c0_i32, %c0_i32_0 : i32, i32
  }
  func.func @transform_5(%arg0: i32) -> (i32, i32) {
    %c0_i32 = arith.constant 0 : i32
    %c0_i32_0 = arith.constant 0 : i32
    %c0_i32_1 = arith.constant 0 : i32
    return %c0_i32, %c0_i32_0 : i32, i32
  }
  func.func @transform_6(%arg0: i32) -> (i32, i32) {
    %c0_i32 = arith.constant 0 : i32
    %c0_i32_0 = arith.constant 0 : i32
    %c0_i32_1 = arith.constant 0 : i32
    return %c0_i32, %c0_i32_0 : i32, i32
  }
  func.func @transform_7(%arg0: i32) -> (i32, i32) {
    %c0_i32 = arith.constant 0 : i32
    %c0_i32_0 = arith.constant 0 : i32
    return %arg0, %c0_i32 : i32, i32
  }
}

</mosaic_0001>

<llo_original>
// kernel: wide_resnet_block_forward.3
$region0: #{wide_resnet_block_forward.3}
  #allocation0 [shape = 'u32[]', space=smem, size = 0x4, offset = 0x4, fixed_abs, tag = 'smem constant byte address 0x4 - core index']
  #allocation1 [shape = 'u32[144,128]{1,0:T(1,128)}', space=vmem, size = 0x12000, scoped, tag = 'internal scratch']
  %s0 = inlined_call_operand.vmem [shape: f32[512,4], index: 0, kind: input, shape index: {}]
  %s1 = inlined_call_operand.vmem [shape: f32[1,4], index: 1, kind: output, shape index: {0}]
  %s2 = inlined_call_operand.vmem [shape: f32[1,4], index: 2, kind: output, shape index: {1}]
  %3 = xla_tuple %s1, %s2
  %s4 = sld [smem:[#allocation0]]
  $region49: #{wide_resnet_block_forward.3} parent=0
    _
  %s6 = ssub.s32 1, %s4
  %s7 = scalar_select 0, %s6, %s4
  loop: start=0, step=1, limit=10
  $region2: #{wide_resnet_block_forward.3} parent=0 // loop_pre_header
    _
  $region3: #{wide_resnet_block_forward.3} parent=0 // loop_header
    %s9 = sphi 0, %s13
    %p10 = scmp.ge.s32.totalorder %s9, 10
    %s19 = sphi 0, %s21
    %s22 = sphi 0, %s19
    %s23 = sphi 0, %s22
    %s39 = sphi 0, %s23
    %s43 = sphi 0, %s43
    %s45 = sphi 0, %s43
    %s46 = sphi 0, %s45
    %s60 = sphi 0, %s46
    %s64 = sphi 0, %s64
    %s66 = sphi 0, %s64
    %s67 = sphi 0, %s66
    %s81 = sphi 0, %s67
  $region4: #{wide_resnet_block_forward.3} parent=0 // loop_header_branch
    %12 = sbr.rel (%p10) target = $region8
  $region5: #{wide_resnet_block_forward.3} parent=0 // loop_body
    %s14 = ssub.s32 %s9, 1
    %s15 = ssub.s32 %s9, 2
    %s16 = sadd.s32 %s9, 1
    %s17 = ssub.s32 %s9, %s16
    %p18 = scmp.eq.s32.totalorder %s17, 0
    %s20 = sadd.s32 %s19, 1
    %s21 = scalar_select %p18, %s19, %s20
    %p24 = pneg %p18
    %p25 = scmp.eq.s32.totalorder %s9, 7
    %p26 = por %p24, %p25
    %p27 = scmp.ne.s32.totalorder %s19, %s22
    %p28 = scmp.eq.s32.totalorder %s9, 0
    %p29 = por %p27, %p28
    %p30 = scmp.ne.s32.totalorder %s19, %s22
    %p31 = scmp.eq.s32.totalorder %s14, 7
    %p32 = por %p30, %p31
    %p33 = scmp.ne.s32.totalorder %s22, %s23
    %p34 = scmp.eq.s32.totalorder %s14, 0
    %p35 = por %p33, %p34
    %p36 = scmp.ne.s32.totalorder %s22, %s23
    %p37 = scmp.eq.s32.totalorder %s15, 7
    %p38 = por %p36, %p37
    %p40 = scmp.ne.s32.totalorder %s23, %s39
    %p41 = scmp.eq.s32.totalorder %s15, 0
    %p42 = por %p40, %p41
    %s44 = sadd.s32 %s43, 1
    %p47 = scmp.eq.s32.totalorder %s9, 7
    %p48 = scmp.ne.s32.totalorder %s43, %s45
    %p49 = scmp.eq.s32.totalorder %s9, 0
    %p50 = por %p48, %p49
    %p51 = scmp.ne.s32.totalorder %s43, %s45
    %p52 = scmp.eq.s32.totalorder %s14, 7
    %p53 = por %p51, %p52
    %p54 = scmp.ne.s32.totalorder %s45, %s46
    %p55 = scmp.eq.s32.totalorder %s14, 0
    %p56 = por %p54, %p55
    %p57 = scmp.ne.s32.totalorder %s45, %s46
    %p58 = scmp.eq.s32.totalorder %s15, 7
    %p59 = por %p57, %p58
    %p61 = scmp.ne.s32.totalorder %s46, %s60
    %p62 = scmp.eq.s32.totalorder %s15, 0
    %p63 = por %p61, %p62
    %s65 = sadd.s32 %s64, 1
    %p68 = scmp.eq.s32.totalorder %s9, 7
    %p69 = scmp.ne.s32.totalorder %s64, %s66
    %p70 = scmp.eq.s32.totalorder %s9, 0
    %p71 = por %p69, %p70
    %p72 = scmp.ne.s32.totalorder %s64, %s66
    %p73 = scmp.eq.s32.totalorder %s14, 7
    %p74 = por %p72, %p73
    %p75 = scmp.ne.s32.totalorder %s66, %s67
    %p76 = scmp.eq.s32.totalorder %s14, 0
    %p77 = por %p75, %p76
    %p78 = scmp.ne.s32.totalorder %s66, %s67
    %p79 = scmp.eq.s32.totalorder %s15, 7
    %p80 = por %p78, %p79
    %p82 = scmp.ne.s32.totalorder %s67, %s81
    %p83 = scmp.eq.s32.totalorder %s15, 0
    %p84 = por %p82, %p83
    %p85 = scmp.le.s32.totalorder 1, %s9
    %p86 = scmp.lt.s32.totalorder %s9, 9
    %p87 = pnand %p85, %p86
    %p88 = pneg %p87
    // Predicated region
    $region9: #{wide_resnet_block_forward.3} parent=5 // pred_check
      _
    $region10: #{wide_resnet_block_forward.3} parent=5 // pred_check_branch
      %90 = sbr.rel (%p87) target = $region12
    $region11: #{wide_resnet_block_forward.3} parent=5 // pred_region
      %s91 = ssub.s32 %s9, 1
    $region12: #{wide_resnet_block_forward.3} parent=5 // pred_fallthru
      _
    %p92 = scmp.lt.s32.totalorder %s9, 8
    // Predicated region
    $region13: #{wide_resnet_block_forward.3} parent=5 // pred_check
      %p93 = pneg %p92
    $region14: #{wide_resnet_block_forward.3} parent=5 // pred_check_branch
      %95 = sbr.rel (%p93) target = $region16
    $region15: #{wide_resnet_block_forward.3} parent=5 // pred_region
      // Predicated region
      $region17: #{wide_resnet_block_forward.3} parent=15 // pred_check
        %p96 = pneg %p29
      $region18: #{wide_resnet_block_forward.3} parent=15 // pred_check_branch
        %98 = sbr.rel (%p96) target = $region20
      $region19: #{wide_resnet_block_forward.3} parent=15 // pred_region
        %s99 = smul.u32 8, %s9
        %p100 = scmp.lt.s32.totalorder %s99, 63
        %s101 = scalar_select %p100, %s99, 63
        %s102 = smul.addr %s101, 8
        %s103 = scalar_lea.vmem %s0, %s102
        %s104 = smul.u32 8, %s9
      $region20: #{wide_resnet_block_forward.3} parent=15 // pred_fallthru
        _
    $region16: #{wide_resnet_block_forward.3} parent=5 // pred_fallthru
      _
    %p105 = scmp.le.s32.totalorder 1, %s9
    %p106 = scmp.lt.s32.totalorder %s9, 9
    %p107 = pnand %p105, %p106
    %p108 = pneg %p107
    // Predicated region
    $region21: #{wide_resnet_block_forward.3} parent=5 // pred_check
      _
    $region22: #{wide_resnet_block_forward.3} parent=5 // pred_check_branch
      %110 = sbr.rel (%p107) target = $region24
    $region23: #{wide_resnet_block_forward.3} parent=5 // pred_region
      %s111 = ssub.s32 %s9, 1
      %s112 = smul.u32 8, %s14
      %p113 = scmp.lt.s32.totalorder %s112, 63
      %s114 = scalar_select %p113, %s112, 63
      %s115 = smul.addr %s114, 8
      %s116 = scalar_lea.vmem %s0, %s115
      %p117 = pneg %p35
      %p118 = pneg %p32
      %p119 = pneg %p56
      %p120 = pneg %p53
      %p121 = pneg %p77
      %p122 = pneg %p74
      %s123 = smul.u32 8, %s14
      %p124 = scmp.lt.s32.totalorder %s123, 63
      %s125 = scalar_select %p124, %s123, 63
      %s126 = smul.addr %s125, 8
      %s127 = scalar_lea.vmem %s0, %s126
      %s128 = smul.u32 8, %s14
      %p129 = scmp.eq.s32.totalorder %s14, 0
      // Predicated region
      $region25: #{wide_resnet_block_forward.3} parent=23 // pred_check
        %p130 = pneg %p129
      $region26: #{wide_resnet_block_forward.3} parent=23 // pred_check_branch
        %132 = sbr.rel (%p130) target = $region28
      $region27: #{wide_resnet_block_forward.3} parent=23 // pred_region
        %vm133 = vcmask 24576
        %134 = vst.msk [vmem:[%s1] sm:$0x1] %vm133, 0.0
        %135 = vst.msk [vmem:[%s2] sm:$0x1] %vm133, 0.0
      $region28: #{wide_resnet_block_forward.3} parent=23 // pred_fallthru
        _
      %v136 = vld [vmem:[%s127] sm:$0xff]
      %v137 = vld [vmem:[%s127 + $0x8] sm:$0xff]
      %v138 = vld [vmem:[%s127 + $0x10] sm:$0xff]
      %v139 = vld [vmem:[%s127 + $0x18] sm:$0xff]
      %v140 = vld [vmem:[%s127 + $0x20] sm:$0xff]
      %v141 = vld [vmem:[%s127 + $0x28] sm:$0xff]
      %v142 = vld [vmem:[%s127 + $0x30] sm:$0xff]
      %v143 = vld [vmem:[%s127 + $0x38] sm:$0xff]
      %v144 = vld [vmem:[%s1] sm:$0x1]
      %vm145 = vcmask 31744
      %v146 = vsel %vm145, %v136, 0.0
      %v147 = vsel %vm145, %v137, 0.0
      %v148 = vadd.f32 %v146, %v147
      %v149 = vsel %vm145, %v138, 0.0
      %v150 = vadd.f32 %v148, %v149
      %v151 = vsel %vm145, %v139, 0.0
      %v152 = vadd.f32 %v150, %v151
      %v153 = vsel %vm145, %v140, 0.0
      %v154 = vadd.f32 %v152, %v153
      %v155 = vsel %vm145, %v141, 0.0
      %v156 = vadd.f32 %v154, %v155
      %v157 = vsel %vm145, %v142, 0.0
      %v158 = vadd.f32 %v156, %v157
      %v159 = vsel %vm145, %v143, 0.0
      %v160 = vadd.f32 %v158, %v159
      %v161 = vrot.slane %v160, 4
      %v162 = vadd.f32 %v160, %v161
      %v163 = vrot.slane %v162, 2
      %v164 = vadd.f32 %v162, %v163
      %v165 = vrot.slane %v164, 1
      %v166 = vadd.f32 %v164, %v165
      %v167 = vadd.f32 %v144, %v166
      %vm168 = vcmask 24576
      %169 = vst.msk [vmem:[%s1] sm:$0x1] %vm168, %v167
      %v170 = vld [vmem:[%s2] sm:$0x1]
      %v171 = vmul.f32 %v136, %v136
      %v172 = vmul.f32 %v137, %v137
      %v173 = vmul.f32 %v138, %v138
      %v174 = vmul.f32 %v139, %v139
      %v175 = vmul.f32 %v140, %v140
      %v176 = vmul.f32 %v141, %v141
      %v177 = vmul.f32 %v142, %v142
      %v178 = vmul.f32 %v143, %v143
      %v179 = vsel %vm145, %v171, 0.0
      %v180 = vsel %vm145, %v172, 0.0
      %v181 = vadd.f32 %v179, %v180
      %v182 = vsel %vm145, %v173, 0.0
      %v183 = vadd.f32 %v181, %v182
      %v184 = vsel %vm145, %v174, 0.0
      %v185 = vadd.f32 %v183, %v184
      %v186 = vsel %vm145, %v175, 0.0
      %v187 = vadd.f32 %v185, %v186
      %v188 = vsel %vm145, %v176, 0.0
      %v189 = vadd.f32 %v187, %v188
      %v190 = vsel %vm145, %v177, 0.0
      %v191 = vadd.f32 %v189, %v190
      %v192 = vsel %vm145, %v178, 0.0
      %v193 = vadd.f32 %v191, %v192
      %v194 = vrot.slane %v193, 4
      %v195 = vadd.f32 %v193, %v194
      %v196 = vrot.slane %v195, 2
      %v197 = vadd.f32 %v195, %v196
      %v198 = vrot.slane %v197, 1
      %v199 = vadd.f32 %v197, %v198
      %v200 = vadd.f32 %v170, %v199
      %201 = vst.msk [vmem:[%s2] sm:$0x1] %vm168, %v200
      // Predicated region
      $region29: #{wide_resnet_block_forward.3} parent=23 // pred_check
        %p202 = pneg %p53
      $region30: #{wide_resnet_block_forward.3} parent=23 // pred_check_branch
        %204 = sbr.rel (%p202) target = $region32
      $region31: #{wide_resnet_block_forward.3} parent=23 // pred_region
        _
      $region32: #{wide_resnet_block_forward.3} parent=23 // pred_fallthru
        _
      // Predicated region
      $region33: #{wide_resnet_block_forward.3} parent=23 // pred_check
        %p205 = pneg %p74
      $region34: #{wide_resnet_block_forward.3} parent=23 // pred_check_branch
        %207 = sbr.rel (%p205) target = $region36
      $region35: #{wide_resnet_block_forward.3} parent=23 // pred_region
        _
      $region36: #{wide_resnet_block_forward.3} parent=23 // pred_fallthru
        _
      // Predicated region
      $region37: #{wide_resnet_block_forward.3} parent=23 // pred_check
        %p208 = pneg %p53
      $region38: #{wide_resnet_block_forward.3} parent=23 // pred_check_branch
        %210 = sbr.rel (%p208) target = $region40
      $region39: #{wide_resnet_block_forward.3} parent=23 // pred_region
        _
      $region40: #{wide_resnet_block_forward.3} parent=23 // pred_fallthru
        _
      // Predicated region
      $region41: #{wide_resnet_block_forward.3} parent=23 // pred_check
        %p211 = pneg %p74
      $region42: #{wide_resnet_block_forward.3} parent=23 // pred_check_branch
        %213 = sbr.rel (%p211) target = $region44
      $region43: #{wide_resnet_block_forward.3} parent=23 // pred_region
        _
      $region44: #{wide_resnet_block_forward.3} parent=23 // pred_fallthru
        _
    $region24: #{wide_resnet_block_forward.3} parent=5 // pred_fallthru
      _
    %p214 = scmp.le.s32.totalorder 2, %s9
    // Predicated region
    $region45: #{wide_resnet_block_forward.3} parent=5 // pred_check
      %p215 = pneg %p214
    $region46: #{wide_resnet_block_forward.3} parent=5 // pred_check_branch
      %217 = sbr.rel (%p215) target = $region48
    $region47: #{wide_resnet_block_forward.3} parent=5 // pred_region
      %s218 = ssub.s32 %s9, 2
    $region48: #{wide_resnet_block_forward.3} parent=5 // pred_fallthru
      _
  $region6: #{wide_resnet_block_forward.3} parent=0 // loop_footer
    %s13 = sadd.s32 1, %s9
  $region7: #{wide_resnet_block_forward.3} parent=0 // loop_footer_branch
    %8 = sbr.rel target = $region3
  $region8: #{wide_resnet_block_forward.3} parent=0 // loop_exit
    _

// kernel: wide_resnet_block_forward.4
$region0: #{wide_resnet_block_forward.4}
  #allocation0 [shape = 'u32[]', space=smem, size = 0x4, offset = 0x4, fixed_abs, tag = 'smem constant byte address 0x4 - core index']
  #allocation1 [shape = 'u32[144,128]{1,0:T(1,128)}', space=vmem, size = 0x12000, scoped, tag = 'internal scratch']
  %s0 = inlined_call_operand.vmem [shape: bf16[128,36], index: 0, kind: input, shape index: {}]
  %s1 = inlined_call_operand.vmem [shape: bf16[36,8], index: 1, kind: input, shape index: {}]
  %s2 = inlined_call_operand.vmem [shape: bf16[4,8], index: 2, kind: input, shape index: {}]
  %s3 = inlined_call_operand.vmem [shape: f32[1,36], index: 3, kind: input, shape index: {}]
  %s4 = inlined_call_operand.vmem [shape: f32[1,36], index: 4, kind: input, shape index: {}]
  %s5 = inlined_call_operand.vmem [shape: bf16[128,8], index: 5, kind: output, shape index: {0}]
  %s6 = inlined_call_operand.vmem [shape: bf16[128,8], index: 6, kind: output, shape index: {1}]
  %s7 = inlined_call_operand.vmem [shape: f32[2,4,8], index: 7, kind: output, shape index: {2}]
  %8 = xla_tuple %s5, %s6, %s7
  %s9 = sld [smem:[#allocation0]]
  $region69: #{wide_resnet_block_forward.4} parent=0
    _
  %s11 = ssub.s32 1, %s9
  %s12 = scalar_select 0, %s11, %s9
  loop: start=0, step=1, limit=4
  $region2: #{wide_resnet_block_forward.4} parent=0 // loop_pre_header
    _
  $region3: #{wide_resnet_block_forward.4} parent=0 // loop_header
    %s14 = sphi 0, %s18
    %p15 = scmp.ge.s32.totalorder %s14, 4
    %s24 = sphi 0, %s26
    %s27 = sphi 0, %s24
    %s28 = sphi 0, %s27
    %s44 = sphi 0, %s28
    %s48 = sphi 0, %s48
    %s50 = sphi 0, %s48
    %s51 = sphi 0, %s50
    %s65 = sphi 0, %s51
    %s69 = sphi 0, %s69
    %s71 = sphi 0, %s69
    %s72 = sphi 0, %s71
    %s86 = sphi 0, %s72
    %s90 = sphi 0, %s90
    %s92 = sphi 0, %s90
    %s93 = sphi 0, %s92
    %s107 = sphi 0, %s93
    %s111 = sphi 0, %s111
    %s113 = sphi 0, %s111
    %s114 = sphi 0, %s113
    %s128 = sphi 0, %s114
    %s134 = sphi 0, %s136
    %s137 = sphi 0, %s134
    %s138 = sphi 0, %s137
    %s154 = sphi 0, %s138
    %s160 = sphi 0, %s162
    %s163 = sphi 0, %s160
    %s164 = sphi 0, %s163
    %s180 = sphi 0, %s164
    %s186 = sphi 0, %s188
    %s189 = sphi 0, %s186
    %s190 = sphi 0, %s189
    %s206 = sphi 0, %s190
  $region4: #{wide_resnet_block_forward.4} parent=0 // loop_header_branch
    %17 = sbr.rel (%p15) target = $region8
  $region5: #{wide_resnet_block_forward.4} parent=0 // loop_body
    %s19 = ssub.s32 %s14, 1
    %s20 = ssub.s32 %s14, 2
    %s21 = sadd.s32 %s14, 1
    %s22 = ssub.s32 %s14, %s21
    %p23 = scmp.eq.s32.totalorder %s22, 0
    %s25 = sadd.s32 %s24, 1
    %s26 = scalar_select %p23, %s24, %s25
    %p29 = pneg %p23
    %p30 = scmp.eq.s32.totalorder %s14, 1
    %p31 = por %p29, %p30
    %p32 = scmp.ne.s32.totalorder %s24, %s27
    %p33 = scmp.eq.s32.totalorder %s14, 0
    %p34 = por %p32, %p33
    %p35 = scmp.ne.s32.totalorder %s24, %s27
    %p36 = scmp.eq.s32.totalorder %s19, 1
    %p37 = por %p35, %p36
    %p38 = scmp.ne.s32.totalorder %s27, %s28
    %p39 = scmp.eq.s32.totalorder %s19, 0
    %p40 = por %p38, %p39
    %p41 = scmp.ne.s32.totalorder %s27, %s28
    %p42 = scmp.eq.s32.totalorder %s20, 1
    %p43 = por %p41, %p42
    %p45 = scmp.ne.s32.totalorder %s28, %s44
    %p46 = scmp.eq.s32.totalorder %s20, 0
    %p47 = por %p45, %p46
    %s49 = sadd.s32 %s48, 1
    %p52 = scmp.eq.s32.totalorder %s14, 1
    %p53 = scmp.ne.s32.totalorder %s48, %s50
    %p54 = scmp.eq.s32.totalorder %s14, 0
    %p55 = por %p53, %p54
    %p56 = scmp.ne.s32.totalorder %s48, %s50
    %p57 = scmp.eq.s32.totalorder %s19, 1
    %p58 = por %p56, %p57
    %p59 = scmp.ne.s32.totalorder %s50, %s51
    %p60 = scmp.eq.s32.totalorder %s19, 0
    %p61 = por %p59, %p60
    %p62 = scmp.ne.s32.totalorder %s50, %s51
    %p63 = scmp.eq.s32.totalorder %s20, 1
    %p64 = por %p62, %p63
    %p66 = scmp.ne.s32.totalorder %s51, %s65
    %p67 = scmp.eq.s32.totalorder %s20, 0
    %p68 = por %p66, %p67
    %s70 = sadd.s32 %s69, 1
    %p73 = scmp.eq.s32.totalorder %s14, 1
    %p74 = scmp.ne.s32.totalorder %s69, %s71
    %p75 = scmp.eq.s32.totalorder %s14, 0
    %p76 = por %p74, %p75
    %p77 = scmp.ne.s32.totalorder %s69, %s71
    %p78 = scmp.eq.s32.totalorder %s19, 1
    %p79 = por %p77, %p78
    %p80 = scmp.ne.s32.totalorder %s71, %s72
    %p81 = scmp.eq.s32.totalorder %s19, 0
    %p82 = por %p80, %p81
    %p83 = scmp.ne.s32.totalorder %s71, %s72
    %p84 = scmp.eq.s32.totalorder %s20, 1
    %p85 = por %p83, %p84
    %p87 = scmp.ne.s32.totalorder %s72, %s86
    %p88 = scmp.eq.s32.totalorder %s20, 0
    %p89 = por %p87, %p88
    %s91 = sadd.s32 %s90, 1
    %p94 = scmp.eq.s32.totalorder %s14, 1
    %p95 = scmp.ne.s32.totalorder %s90, %s92
    %p96 = scmp.eq.s32.totalorder %s14, 0
    %p97 = por %p95, %p96
    %p98 = scmp.ne.s32.totalorder %s90, %s92
    %p99 = scmp.eq.s32.totalorder %s19, 1
    %p100 = por %p98, %p99
    %p101 = scmp.ne.s32.totalorder %s92, %s93
    %p102 = scmp.eq.s32.totalorder %s19, 0
    %p103 = por %p101, %p102
    %p104 = scmp.ne.s32.totalorder %s92, %s93
    %p105 = scmp.eq.s32.totalorder %s20, 1
    %p106 = por %p104, %p105
    %p108 = scmp.ne.s32.totalorder %s93, %s107
    %p109 = scmp.eq.s32.totalorder %s20, 0
    %p110 = por %p108, %p109
    %s112 = sadd.s32 %s111, 1
    %p115 = scmp.eq.s32.totalorder %s14, 1
    %p116 = scmp.ne.s32.totalorder %s111, %s113
    %p117 = scmp.eq.s32.totalorder %s14, 0
    %p118 = por %p116, %p117
    %p119 = scmp.ne.s32.totalorder %s111, %s113
    %p120 = scmp.eq.s32.totalorder %s19, 1
    %p121 = por %p119, %p120
    %p122 = scmp.ne.s32.totalorder %s113, %s114
    %p123 = scmp.eq.s32.totalorder %s19, 0
    %p124 = por %p122, %p123
    %p125 = scmp.ne.s32.totalorder %s113, %s114
    %p126 = scmp.eq.s32.totalorder %s20, 1
    %p127 = por %p125, %p126
    %p129 = scmp.ne.s32.totalorder %s114, %s128
    %p130 = scmp.eq.s32.totalorder %s20, 0
    %p131 = por %p129, %p130
    %s132 = ssub.s32 %s14, %s21
    %p133 = scmp.eq.s32.totalorder %s132, 0
    %s135 = sadd.s32 %s134, 1
    %s136 = scalar_select %p133, %s134, %s135
    %p139 = pneg %p133
    %p140 = scmp.eq.s32.totalorder %s14, 1
    %p141 = por %p139, %p140
    %p142 = scmp.ne.s32.totalorder %s134, %s137
    %p143 = scmp.eq.s32.totalorder %s14, 0
    %p144 = por %p142, %p143
    %p145 = scmp.ne.s32.totalorder %s134, %s137
    %p146 = scmp.eq.s32.totalorder %s19, 1
    %p147 = por %p145, %p146
    %p148 = scmp.ne.s32.totalorder %s137, %s138
    %p149 = scmp.eq.s32.totalorder %s19, 0
    %p150 = por %p148, %p149
    %p151 = scmp.ne.s32.totalorder %s137, %s138
    %p152 = scmp.eq.s32.totalorder %s20, 1
    %p153 = por %p151, %p152
    %p155 = scmp.ne.s32.totalorder %s138, %s154
    %p156 = scmp.eq.s32.totalorder %s20, 0
    %p157 = por %p155, %p156
    %s158 = ssub.s32 %s14, %s21
    %p159 = scmp.eq.s32.totalorder %s158, 0
    %s161 = sadd.s32 %s160, 1
    %s162 = scalar_select %p159, %s160, %s161
    %p165 = pneg %p159
    %p166 = scmp.eq.s32.totalorder %s14, 1
    %p167 = por %p165, %p166
    %p168 = scmp.ne.s32.totalorder %s160, %s163
    %p169 = scmp.eq.s32.totalorder %s14, 0
    %p170 = por %p168, %p169
    %p171 = scmp.ne.s32.totalorder %s160, %s163
    %p172 = scmp.eq.s32.totalorder %s19, 1
    %p173 = por %p171, %p172
    %p174 = scmp.ne.s32.totalorder %s163, %s164
    %p175 = scmp.eq.s32.totalorder %s19, 0
    %p176 = por %p174, %p175
    %p177 = scmp.ne.s32.totalorder %s163, %s164
    %p178 = scmp.eq.s32.totalorder %s20, 1
    %p179 = por %p177, %p178
    %p181 = scmp.ne.s32.totalorder %s164, %s180
    %p182 = scmp.eq.s32.totalorder %s20, 0
    %p183 = por %p181, %p182
    %s184 = ssub.s32 %s14, %s21
    %p185 = scmp.eq.s32.totalorder %s184, 0
    %s187 = sadd.s32 %s186, 1
    %s188 = scalar_select %p185, %s186, %s187
    %p191 = pneg %p185
    %p192 = scmp.eq.s32.totalorder %s14, 1
    %p193 = por %p191, %p192
    %p194 = scmp.ne.s32.totalorder %s186, %s189
    %p195 = scmp.eq.s32.totalorder %s14, 0
    %p196 = por %p194, %p195
    %p197 = scmp.ne.s32.totalorder %s186, %s189
    %p198 = scmp.eq.s32.totalorder %s19, 1
    %p199 = por %p197, %p198
    %p200 = scmp.ne.s32.totalorder %s189, %s190
    %p201 = scmp.eq.s32.totalorder %s19, 0
    %p202 = por %p200, %p201
    %p203 = scmp.ne.s32.totalorder %s189, %s190
    %p204 = scmp.eq.s32.totalorder %s20, 1
    %p205 = por %p203, %p204
    %p207 = scmp.ne.s32.totalorder %s190, %s206
    %p208 = scmp.eq.s32.totalorder %s20, 0
    %p209 = por %p207, %p208
    %p210 = scmp.le.s32.totalorder 1, %s14
    %p211 = scmp.lt.s32.totalorder %s14, 3
    %p212 = pnand %p210, %p211
    %p213 = pneg %p212
    // Predicated region
    $region9: #{wide_resnet_block_forward.4} parent=5 // pred_check
      _
    $region10: #{wide_resnet_block_forward.4} parent=5 // pred_check_branch
      %215 = sbr.rel (%p212) target = $region12
    $region11: #{wide_resnet_block_forward.4} parent=5 // pred_region
      %s216 = ssub.s32 %s14, 1
      // Predicated region
      $region13: #{wide_resnet_block_forward.4} parent=11 // pred_check
        %p217 = pneg %p61
      $region14: #{wide_resnet_block_forward.4} parent=11 // pred_check_branch
        %219 = sbr.rel (%p217) target = $region16
      $region15: #{wide_resnet_block_forward.4} parent=11 // pred_region
        _
      $region16: #{wide_resnet_block_forward.4} parent=11 // pred_fallthru
        _
      // Predicated region
      $region17: #{wide_resnet_block_forward.4} parent=11 // pred_check
        %p220 = pneg %p82
      $region18: #{wide_resnet_block_forward.4} parent=11 // pred_check_branch
        %222 = sbr.rel (%p220) target = $region20
      $region19: #{wide_resnet_block_forward.4} parent=11 // pred_region
        _
      $region20: #{wide_resnet_block_forward.4} parent=11 // pred_fallthru
        _
      // Predicated region
      $region21: #{wide_resnet_block_forward.4} parent=11 // pred_check
        %p223 = pneg %p103
      $region22: #{wide_resnet_block_forward.4} parent=11 // pred_check_branch
        %225 = sbr.rel (%p223) target = $region24
      $region23: #{wide_resnet_block_forward.4} parent=11 // pred_region
        _
      $region24: #{wide_resnet_block_forward.4} parent=11 // pred_fallthru
        _
      // Predicated region
      $region25: #{wide_resnet_block_forward.4} parent=11 // pred_check
        %p226 = pneg %p124
      $region26: #{wide_resnet_block_forward.4} parent=11 // pred_check_branch
        %228 = sbr.rel (%p226) target = $region28
      $region27: #{wide_resnet_block_forward.4} parent=11 // pred_region
        _
      $region28: #{wide_resnet_block_forward.4} parent=11 // pred_fallthru
        _
    $region12: #{wide_resnet_block_forward.4} parent=5 // pred_fallthru
      _
    %p229 = scmp.lt.s32.totalorder %s14, 2
    // Predicated region
    $region29: #{wide_resnet_block_forward.4} parent=5 // pred_check
      %p230 = pneg %p229
    $region30: #{wide_resnet_block_forward.4} parent=5 // pred_check_branch
      %232 = sbr.rel (%p230) target = $region32
    $region31: #{wide_resnet_block_forward.4} parent=5 // pred_region
      // Predicated region
      $region33: #{wide_resnet_block_forward.4} parent=31 // pred_check
        %p233 = pneg %p34
      $region34: #{wide_resnet_block_forward.4} parent=31 // pred_check_branch
        %235 = sbr.rel (%p233) target = $region36
      $region35: #{wide_resnet_block_forward.4} parent=31 // pred_region
        %s236 = smul.u32 8, %s14
        %p237 = scmp.lt.s32.totalorder %s236, 15
        %s238 = scalar_select %p237, %s236, 15
        %s239 = smul.addr %s238, 4
        %s240 = scalar_lea.vmem %s0, %s239
        %s241 = smul.u32 8, %s14
      $region36: #{wide_resnet_block_forward.4} parent=31 // pred_fallthru
        _
    $region32: #{wide_resnet_block_forward.4} parent=5 // pred_fallthru
      _
    %p242 = scmp.le.s32.totalorder 1, %s14
    %p243 = scmp.lt.s32.totalorder %s14, 3
    %p244 = pnand %p242, %p243
    %p245 = pneg %p244
    // Predicated region
    $region37: #{wide_resnet_block_forward.4} parent=5 // pred_check
      _
    $region38: #{wide_resnet_block_forward.4} parent=5 // pred_check_branch
      %247 = sbr.rel (%p244) target = $region40
    $region39: #{wide_resnet_block_forward.4} parent=5 // pred_region
      %s248 = ssub.s32 %s14, 1
      %s249 = smul.u32 8, %s19
      %p250 = scmp.lt.s32.totalorder %s249, 15
      %s251 = scalar_select %p250, %s249, 15
      %s252 = smul.addr %s251, 4
      %s253 = scalar_lea.vmem %s0, %s252
      %p254 = pneg %p40
      %p255 = pneg %p37
      %p256 = pneg %p61
      %p257 = pneg %p58
      %p258 = pneg %p82
      %p259 = pneg %p79
      %p260 = pneg %p103
      %p261 = pneg %p100
      %p262 = pneg %p124
      %p263 = pneg %p121
      %p264 = pneg %p150
      %p265 = pneg %p147
      %s266 = smul.u32 8, %s19
      %p267 = scmp.lt.s32.totalorder %s266, 15
      %s268 = scalar_select %p267, %s266, 15
      %s269 = smul.addr %s268, 4
      %s270 = scalar_lea.vmem %s5, %s269
      %p271 = pneg %p176
      %p272 = pneg %p173
      %s273 = smul.u32 8, %s19
      %p274 = scmp.lt.s32.totalorder %s273, 15
      %s275 = scalar_select %p274, %s273, 15
      %s276 = smul.addr %s275, 4
      %s277 = scalar_lea.vmem %s6, %s276
      %p278 = pneg %p202
      %p279 = pneg %p199
      %p280 = scmp.lt.s32.totalorder %s19, 1
      %s281 = scalar_select %p280, %s19, 1
      %s282 = smul.addr %s281, 4
      %s283 = scalar_lea.vmem %s7, %s282
      %s284 = smul.u32 8, %s19
      %p285 = scmp.lt.s32.totalorder %s284, 15
      %s286 = scalar_select %p285, %s284, 15
      %s287 = smul.addr %s286, 4
      %s288 = scalar_lea.vmem %s0, %s287
      %s289 = smul.u32 8, %s19
      %s290 = smul.u32 8, %s19
      %p291 = scmp.lt.s32.totalorder %s290, 15
      %s292 = scalar_select %p291, %s290, 15
      %s293 = smul.addr %s292, 4
      %s294 = scalar_lea.vmem %s5, %s293
      %s295 = smul.u32 8, %s19
      %s296 = smul.u32 8, %s19
      %p297 = scmp.lt.s32.totalorder %s296, 15
      %s298 = scalar_select %p297, %s296, 15
      %s299 = smul.addr %s298, 4
      %s300 = scalar_lea.vmem %s6, %s299
      %s301 = smul.u32 8, %s19
      %p302 = scmp.lt.s32.totalorder %s19, 1
      %s303 = scalar_select %p302, %s19, 1
      %s304 = smul.addr %s303, 4
      %s305 = scalar_lea.vmem %s7, %s304
      %v307 = vld [vmem:[%s288] sm:$0xf]
      %v308 = vld [vmem:[%s288 + $0x4] sm:$0xf]
      %v309 = vld [vmem:[%s288 + $0x8] sm:$0xf]
      %v310 = vld [vmem:[%s288 + $0xc] sm:$0xf]
      %v311 = vld [vmem:[%s288 + $0x10] sm:$0xf]
      %v312 = vld [vmem:[%s288 + $0x14] sm:$0xf]
      %v313 = vld [vmem:[%s288 + $0x18] sm:$0xf]
      %v314 = vld [vmem:[%s288 + $0x1c] sm:$0xf]
      %v315 = vunpack.c.l.bf16 %v307
      %v316 = vunpack.c.l.bf16 %v308
      %v317 = vunpack.c.l.bf16 %v309
      %v318 = vunpack.c.l.bf16 %v310
      %v319 = vunpack.c.l.bf16 %v311
      %v320 = vunpack.c.l.bf16 %v312
      %v321 = vunpack.c.l.bf16 %v313
      %v322 = vunpack.c.l.bf16 %v314
      %v323 = vld [vmem:[%s3] sm:$0x1]
      %v325 = vlaneseq
      %v326 = vshrl.u32 %v325, 7
      %v327 = vsub.s32 0, %v326
      %v328 = vrot.slane %v323, %v327
      %v330 = vmul.f32 %v315, %v328
      %v331 = vmul.f32 %v316, %v328
      %v332 = vmul.f32 %v317, %v328
      %v333 = vmul.f32 %v318, %v328
      %v334 = vmul.f32 %v319, %v328
      %v335 = vmul.f32 %v320, %v328
      %v336 = vmul.f32 %v321, %v328
      %v337 = vmul.f32 %v322, %v328
      %v338 = vld [vmem:[%s4] sm:$0x1]
      %v340 = vlaneseq
      %v341 = vshrl.u32 %v340, 7
      %v342 = vsub.s32 0, %v341
      %v343 = vrot.slane %v338, %v342
      %v345 = vadd.f32 %v330, %v343
      %v346 = vadd.f32 %v331, %v343
      %v347 = vadd.f32 %v332, %v343
      %v348 = vadd.f32 %v333, %v343
      %v349 = vadd.f32 %v334, %v343
      %v350 = vadd.f32 %v335, %v343
      %v351 = vadd.f32 %v336, %v343
      %v352 = vadd.f32 %v337, %v343
      %vm353 = vcmp.ge.f32.partialorder %v345, 0.0
      %vm354 = vcmp.ge.f32.partialorder %v346, 0.0
      %vm355 = vcmp.ge.f32.partialorder %v347, 0.0
      %vm356 = vcmp.ge.f32.partialorder %v348, 0.0
      %vm357 = vcmp.ge.f32.partialorder %v349, 0.0
      %vm358 = vcmp.ge.f32.partialorder %v350, 0.0
      %vm359 = vcmp.ge.f32.partialorder %v351, 0.0
      %vm360 = vcmp.ge.f32.partialorder %v352, 0.0
      %v361 = vmul.f32 %v345, 0.1
      %v362 = vmul.f32 %v346, 0.1
      %v363 = vmul.f32 %v347, 0.1
      %v364 = vmul.f32 %v348, 0.1
      %v365 = vmul.f32 %v349, 0.1
      %v366 = vmul.f32 %v350, 0.1
      %v367 = vmul.f32 %v351, 0.1
      %v368 = vmul.f32 %v352, 0.1
      %v369 = vsel %vm353, %v345, %v361
      %v370 = vsel %vm354, %v346, %v362
      %v371 = vsel %vm355, %v347, %v363
      %v372 = vsel %vm356, %v348, %v364
      %v373 = vsel %vm357, %v349, %v365
      %v374 = vsel %vm358, %v350, %v366
      %v375 = vsel %vm359, %v351, %v367
      %v376 = vsel %vm360, %v352, %v368
      %v377 = vpack.c.bf16 %v370, %v369
      %v378 = vpack.c.bf16 %v372, %v371
      %v379 = vpack.c.bf16 %v374, %v373
      %v380 = vpack.c.bf16 %v376, %v375
      %v381 = vld [vmem:[%s1] sm:$0xf]
      %v382 = vld [vmem:[%s1 + $0x4] sm:$0xf]
      %v383 = vld [vmem:[%s1 + $0x8] sm:$0xf]
      %v384 = vld [vmem:[%s1 + $0xc] sm:$0xf]
      %v385 = vld [vmem:[%s1 + $0x10] sm:$0x3]
      %v391 = vunpack.c.l.b16 %v381
      %v392 = vunpack.c.l.b16 %v382
      %v393 = vunpack.c.l.b16 %v383
      %v394 = vunpack.c.l.b16 %v384
      %v395 = vunpack.c.l.b16 %v385
      %v396 = vpack.c.b16 %v392, %v391
      %v397 = vpack.c.b16 %v394, %v393
      %v398 = vpack.c.b16 %v395, %v395
      %vm401 = vcmask 293888
      %v403 = vsel %vm401, %v377, 0
      %v406 = vsel %vm401, %v378, 0
      %v409 = vsel %vm401, %v379, 0
      %v412 = vsel %vm401, %v380, 0
      %vm414 = vcmask 1041408
      %v416 = vsel %vm414, %v398, 0
      %418 = vmatprep.subr.bf16.mxu0 0
      %419 = vmatpush1.bf16.msra.mxu0 %v396
      %420 = vmatprep.subr.bf16.mxu0 0
      %421 = vmatpush1.bf16.msra.mxu0 %v397
      %422 = vmatprep.subr.bf16.mxu0 0
      %423 = vmatpush1.bf16.msra.mxu0 %v416
      %424 = vmatprep.subr.bf16.mxu0 0
      %425 = vmatpush1.bf16.msra.mxu0 0
      %426 = vmatprep.subr.bf16.mxu0 0
      %427 = vmatpush1.bf16.msra.mxu0 0
      %428 = vmatprep.subr.bf16.mxu0 0
      %429 = vmatpush1.bf16.msra.mxu0 0
      %430 = vmatprep.subr.bf16.mxu0 0
      %431 = vmatpush1.bf16.msra.mxu0 0
      %432 = vmatprep.subr.bf16.mxu0 0
      %433 = vmatpush1.bf16.msra.mxu0 0
      %434 = vmatprep.subr.bf16.mxu0 0
      %435 = vmatpush1.bf16.msra.mxu0 0
      %436 = vmatprep.subr.bf16.mxu0 0
      %437 = vmatpush1.bf16.msra.mxu0 0
      %438 = vmatprep.subr.bf16.mxu0 0
      %439 = vmatpush1.bf16.msra.mxu0 0
      %440 = vmatprep.subr.bf16.mxu0 0
      %441 = vmatpush1.bf16.msra.mxu0 0
      %442 = vmatprep.subr.bf16.mxu0 0
      %443 = vmatpush1.bf16.msra.mxu0 0
      %444 = vmatprep.subr.bf16.mxu0 0
      %445 = vmatpush1.bf16.msra.mxu0 0
      %446 = vmatprep.subr.bf16.mxu0 0
      %447 = vmatpush1.bf16.msra.mxu0 0
      %448 = vmatprep.subr.bf16.mxu0 0
      %449 = vmatpush1.bf16.msra.mxu0 0
      %450 = vmatprep.mubr.bf16.mxu0 0
      %451 = vmatmul.mubr.bf16.gmra.mrb[0].mxu0 %v403
      %v452 = vpop.f32.mrb[0].mxu0
      %v453 = vadd.f32 0.0, %v452
      %v454 = vpop.f32.mrb[0].mxu0
      %v455 = vpop.f32.mrb[0].mxu0
      %v456 = vadd.f32 0.0, %v455
      %v457 = vpop.f32.mrb[0].mxu0
      %458 = vmatprep.mubr.bf16.mxu0 0
      %459 = vmatmul.mubr.bf16.gmra.mrb[0].mxu0 %v406
      %v460 = vpop.f32.mrb[0].mxu0
      %v461 = vadd.f32 0.0, %v460
      %v462 = vpop.f32.mrb[0].mxu0
      %v463 = vpop.f32.mrb[0].mxu0
      %v464 = vadd.f32 0.0, %v463
      %v465 = vpop.f32.mrb[0].mxu0
      %466 = vmatprep.mubr.bf16.mxu0 0
      %467 = vmatmul.mubr.bf16.gmra.mrb[0].mxu0 %v409
      %v468 = vpop.f32.mrb[0].mxu0
      %v469 = vadd.f32 0.0, %v468
      %v470 = vpop.f32.mrb[0].mxu0
      %v471 = vpop.f32.mrb[0].mxu0
      %v472 = vadd.f32 0.0, %v471
      %v473 = vpop.f32.mrb[0].mxu0
      %474 = vmatprep.mubr.bf16.mxu0 0
      %475 = vmatmul.mubr.bf16.gmra.mrb[0].mxu0 %v412
      %v476 = vpop.f32.mrb[0].mxu0
      %v477 = vadd.f32 0.0, %v476
      %v478 = vpop.f32.mrb[0].mxu0
      %v479 = vpop.f32.mrb[0].mxu0
      %v480 = vadd.f32 0.0, %v479
      %v481 = vpop.f32.mrb[0].mxu0
      %482 = vdwg.mxu0
      %v483 = vpack.c.bf16 %v456, %v453
      %v484 = vpack.c.bf16 %v464, %v461
      %v485 = vpack.c.bf16 %v472, %v469
      %v486 = vpack.c.bf16 %v480, %v477
      %v491 = vunpack.c.l.b16 %v483
      %v492 = vunpack.c.h.b16 %v483
      %v493 = vunpack.c.l.b16 %v484
      %v494 = vunpack.c.h.b16 %v484
      %v495 = vunpack.c.l.b16 %v485
      %v496 = vunpack.c.h.b16 %v485
      %v497 = vunpack.c.l.b16 %v486
      %v498 = vunpack.c.h.b16 %v486
      %v499 = vpack.c.b16 %v491, %v491
      %v500 = vpack.c.b16 %v492, %v492
      %v501 = vpack.c.b16 %v493, %v493
      %v502 = vpack.c.b16 %v494, %v494
      %v503 = vpack.c.b16 %v495, %v495
      %v504 = vpack.c.b16 %v496, %v496
      %v505 = vpack.c.b16 %v497, %v497
      %v506 = vpack.c.b16 %v498, %v498
      %vm515 = vcmask 60416
      %516 = vst.msk [vmem:[%s294] sm:$0xf] %vm515, %v499
      %517 = vst.msk [vmem:[%s294 + $0x4] sm:$0xf] %vm515, %v500
      %518 = vst.msk [vmem:[%s294 + $0x8] sm:$0xf] %vm515, %v501
      %519 = vst.msk [vmem:[%s294 + $0xc] sm:$0xf] %vm515, %v502
      %520 = vst.msk [vmem:[%s294 + $0x10] sm:$0xf] %vm515, %v503
      %521 = vst.msk [vmem:[%s294 + $0x14] sm:$0xf] %vm515, %v504
      %522 = vst.msk [vmem:[%s294 + $0x18] sm:$0xf] %vm515, %v505
      %523 = vst.msk [vmem:[%s294 + $0x1c] sm:$0xf] %vm515, %v506
      %v524 = vld [vmem:[%s2] sm:$0x3]
      %529 = vrot.lane.b32.xlu0 %v377, 112
      %v530 = vpop.permute.xlu0 %529
      %531 = vrot.lane.b32.xlu0 %v378, 112
      %v532 = vpop.permute.xlu0 %531
      %533 = vrot.lane.b32.xlu0 %v379, 112
      %v534 = vpop.permute.xlu0 %533
      %535 = vrot.lane.b32.xlu0 %v380, 112
      %v536 = vpop.permute.xlu0 %535
      %vm537 = vcmask 31744
      %v539 = vsel %vm537, %v530, 0
      %v542 = vsel %vm537, %v532, 0
      %v545 = vsel %vm537, %v534, 0
      %v548 = vsel %vm537, %v536, 0
      %v551 = vsel %vm414, %v524, 0
      %553 = vmatprep.subr.bf16.mxu0 0
      %554 = vmatpush1.bf16.msra.mxu0 %v551
      %555 = vmatprep.subr.bf16.mxu0 0
      %556 = vmatpush1.bf16.msra.mxu0 0
      %557 = vmatprep.subr.bf16.mxu0 0
      %558 = vmatpush1.bf16.msra.mxu0 0
      %559 = vmatprep.subr.bf16.mxu0 0
      %560 = vmatpush1.bf16.msra.mxu0 0
      %561 = vmatprep.subr.bf16.mxu0 0
      %562 = vmatpush1.bf16.msra.mxu0 0
      %563 = vmatprep.subr.bf16.mxu0 0
      %564 = vmatpush1.bf16.msra.mxu0 0
      %565 = vmatprep.subr.bf16.mxu0 0
      %566 = vmatpush1.bf16.msra.mxu0 0
      %567 = vmatprep.subr.bf16.mxu0 0
      %568 = vmatpush1.bf16.msra.mxu0 0
      %569 = vmatprep.subr.bf16.mxu0 0
      %570 = vmatpush1.bf16.msra.mxu0 0
      %571 = vmatprep.subr.bf16.mxu0 0
      %572 = vmatpush1.bf16.msra.mxu0 0
      %573 = vmatprep.subr.bf16.mxu0 0
      %574 = vmatpush1.bf16.msra.mxu0 0
      %575 = vmatprep.subr.bf16.mxu0 0
      %576 = vmatpush1.bf16.msra.mxu0 0
      %577 = vmatprep.subr.bf16.mxu0 0
      %578 = vmatpush1.bf16.msra.mxu0 0
      %579 = vmatprep.subr.bf16.mxu0 0
      %580 = vmatpush1.bf16.msra.mxu0 0
      %581 = vmatprep.subr.bf16.mxu0 0
      %582 = vmatpush1.bf16.msra.mxu0 0
      %583 = vmatprep.subr.bf16.mxu0 0
      %584 = vmatpush1.bf16.msra.mxu0 0
      %585 = vmatprep.mubr.bf16.mxu0 0
      %586 = vmatmul.mubr.bf16.gmra.mrb[0].mxu0 %v539
      %v587 = vpop.f32.mrb[0].mxu0
      %v588 = vadd.f32 0.0, %v587
      %v589 = vpop.f32.mrb[0].mxu0
      %v590 = vpop.f32.mrb[0].mxu0
      %v591 = vadd.f32 0.0, %v590
      %v592 = vpop.f32.mrb[0].mxu0
      %593 = vmatprep.mubr.bf16.mxu0 0
      %594 = vmatmul.mubr.bf16.gmra.mrb[0].mxu0 %v542
      %v595 = vpop.f32.mrb[0].mxu0
      %v596 = vadd.f32 0.0, %v595
      %v597 = vpop.f32.mrb[0].mxu0
      %v598 = vpop.f32.mrb[0].mxu0
      %v599 = vadd.f32 0.0, %v598
      %v600 = vpop.f32.mrb[0].mxu0
      %601 = vmatprep.mubr.bf16.mxu0 0
      %602 = vmatmul.mubr.bf16.gmra.mrb[0].mxu0 %v545
      %v603 = vpop.f32.mrb[0].mxu0
      %v604 = vadd.f32 0.0, %v603
      %v605 = vpop.f32.mrb[0].mxu0
      %v606 = vpop.f32.mrb[0].mxu0
      %v607 = vadd.f32 0.0, %v606
      %v608 = vpop.f32.mrb[0].mxu0
      %609 = vmatprep.mubr.bf16.mxu0 0
      %610 = vmatmul.mubr.bf16.gmra.mrb[0].mxu0 %v548
      %v611 = vpop.f32.mrb[0].mxu0
      %v612 = vadd.f32 0.0, %v611
      %v613 = vpop.f32.mrb[0].mxu0
      %v614 = vpop.f32.mrb[0].mxu0
      %v615 = vadd.f32 0.0, %v614
      %v616 = vpop.f32.mrb[0].mxu0
      %617 = vdwg.mxu0
      %v618 = vpack.c.bf16 %v591, %v588
      %v619 = vpack.c.bf16 %v599, %v596
      %v620 = vpack.c.bf16 %v607, %v604
      %v621 = vpack.c.bf16 %v615, %v612
      %v626 = vunpack.c.l.b16 %v618
      %v627 = vunpack.c.h.b16 %v618
      %v628 = vunpack.c.l.b16 %v619
      %v629 = vunpack.c.h.b16 %v619
      %v630 = vunpack.c.l.b16 %v620
      %v631 = vunpack.c.h.b16 %v620
      %v632 = vunpack.c.l.b16 %v621
      %v633 = vunpack.c.h.b16 %v621
      %v634 = vpack.c.b16 %v626, %v626
      %v635 = vpack.c.b16 %v627, %v627
      %v636 = vpack.c.b16 %v628, %v628
      %v637 = vpack.c.b16 %v629, %v629
      %v638 = vpack.c.b16 %v630, %v630
      %v639 = vpack.c.b16 %v631, %v631
      %v640 = vpack.c.b16 %v632, %v632
      %v641 = vpack.c.b16 %v633, %v633
      %650 = vst.msk [vmem:[%s300] sm:$0xf] %vm515, %v634
      %651 = vst.msk [vmem:[%s300 + $0x4] sm:$0xf] %vm515, %v635
      %652 = vst.msk [vmem:[%s300 + $0x8] sm:$0xf] %vm515, %v636
      %653 = vst.msk [vmem:[%s300 + $0xc] sm:$0xf] %vm515, %v637
      %654 = vst.msk [vmem:[%s300 + $0x10] sm:$0xf] %vm515, %v638
      %655 = vst.msk [vmem:[%s300 + $0x14] sm:$0xf] %vm515, %v639
      %656 = vst.msk [vmem:[%s300 + $0x18] sm:$0xf] %vm515, %v640
      %657 = vst.msk [vmem:[%s300 + $0x1c] sm:$0xf] %vm515, %v641
      %v658 = vlaneseq
      %v659 = vshrl.u32 %v658, 7
      %vm660 = vcmp.eq.s32.totalorder %v659, 0
      %vm661 = vcmask 64512
      %v662 = vsel %vm661, %v453, 0.0
      %v663 = vsel %vm661, %v456, 0.0
      %v664 = vadd.f32 %v662, %v663
      %v665 = vsel %vm661, %v461, 0.0
      %v666 = vadd.f32 %v664, %v665
      %v667 = vsel %vm661, %v464, 0.0
      %v668 = vadd.f32 %v666, %v667
      %v669 = vsel %vm661, %v469, 0.0
      %v670 = vadd.f32 %v668, %v669
      %v671 = vsel %vm661, %v472, 0.0
      %v672 = vadd.f32 %v670, %v671
      %v673 = vsel %vm661, %v477, 0.0
      %v674 = vadd.f32 %v672, %v673
      %v675 = vsel %vm661, %v480, 0.0
      %v676 = vadd.f32 %v674, %v675
      %v677 = vrot.slane %v676, 4
      %v678 = vadd.f32 %v676, %v677
      %v679 = vrot.slane %v678, 2
      %v680 = vadd.f32 %v678, %v679
      %v681 = vrot.slane %v680, 1
      %v682 = vadd.f32 %v680, %v681
      %v683 = vsel %vm660, %v682, 0.0
      %v684 = vadd.f32 %v683, 0.0
      %vm685 = vcmp.eq.s32.totalorder %v659, 1
      %v686 = vmul.f32 %v453, %v453
      %v687 = vmul.f32 %v456, %v456
      %v688 = vmul.f32 %v461, %v461
      %v689 = vmul.f32 %v464, %v464
      %v690 = vmul.f32 %v469, %v469
      %v691 = vmul.f32 %v472, %v472
      %v692 = vmul.f32 %v477, %v477
      %v693 = vmul.f32 %v480, %v480
      %v694 = vsel %vm661, %v686, 0.0
      %v695 = vsel %vm661, %v687, 0.0
      %v696 = vadd.f32 %v694, %v695
      %v697 = vsel %vm661, %v688, 0.0
      %v698 = vadd.f32 %v696, %v697
      %v699 = vsel %vm661, %v689, 0.0
      %v700 = vadd.f32 %v698, %v699
      %v701 = vsel %vm661, %v690, 0.0
      %v702 = vadd.f32 %v700, %v701
      %v703 = vsel %vm661, %v691, 0.0
      %v704 = vadd.f32 %v702, %v703
      %v705 = vsel %vm661, %v692, 0.0
      %v706 = vadd.f32 %v704, %v705
      %v707 = vsel %vm661, %v693, 0.0
      %v708 = vadd.f32 %v706, %v707
      %v709 = vrot.slane %v708, 4
      %v710 = vadd.f32 %v708, %v709
      %v711 = vrot.slane %v710, 2
      %v712 = vadd.f32 %v710, %v711
      %v713 = vrot.slane %v712, 1
      %v714 = vadd.f32 %v712, %v713
      %v715 = vsel %vm685, %v714, 0.0
      %v716 = vadd.f32 %v684, %v715
      %vm717 = vcmp.eq.s32.totalorder %v659, 2
      %v718 = vsel %vm661, %v588, 0.0
      %v719 = vsel %vm661, %v591, 0.0
      %v720 = vadd.f32 %v718, %v719
      %v721 = vsel %vm661, %v596, 0.0
      %v722 = vadd.f32 %v720, %v721
      %v723 = vsel %vm661, %v599, 0.0
      %v724 = vadd.f32 %v722, %v723
      %v725 = vsel %vm661, %v604, 0.0
      %v726 = vadd.f32 %v724, %v725
      %v727 = vsel %vm661, %v607, 0.0
      %v728 = vadd.f32 %v726, %v727
      %v729 = vsel %vm661, %v612, 0.0
      %v730 = vadd.f32 %v728, %v729
      %v731 = vsel %vm661, %v615, 0.0
      %v732 = vadd.f32 %v730, %v731
      %v733 = vrot.slane %v732, 4
      %v734 = vadd.f32 %v732, %v733
      %v735 = vrot.slane %v734, 2
      %v736 = vadd.f32 %v734, %v735
      %v737 = vrot.slane %v736, 1
      %v738 = vadd.f32 %v736, %v737
      %v739 = vsel %vm717, %v738, 0.0
      %v740 = vadd.f32 %v716, %v739
      %vm741 = vcmp.eq.s32.totalorder %v659, 3
      %v742 = vmul.f32 %v588, %v588
      %v743 = vmul.f32 %v591, %v591
      %v744 = vmul.f32 %v596, %v596
      %v745 = vmul.f32 %v599, %v599
      %v746 = vmul.f32 %v604, %v604
      %v747 = vmul.f32 %v607, %v607
      %v748 = vmul.f32 %v612, %v612
      %v749 = vmul.f32 %v615, %v615
      %v750 = vsel %vm661, %v742, 0.0
      %v751 = vsel %vm661, %v743, 0.0
      %v752 = vadd.f32 %v750, %v751
      %v753 = vsel %vm661, %v744, 0.0
      %v754 = vadd.f32 %v752, %v753
      %v755 = vsel %vm661, %v745, 0.0
      %v756 = vadd.f32 %v754, %v755
      %v757 = vsel %vm661, %v746, 0.0
      %v758 = vadd.f32 %v756, %v757
      %v759 = vsel %vm661, %v747, 0.0
      %v760 = vadd.f32 %v758, %v759
      %v761 = vsel %vm661, %v748, 0.0
      %v762 = vadd.f32 %v760, %v761
      %v763 = vsel %vm661, %v749, 0.0
      %v764 = vadd.f32 %v762, %v763
      %v765 = vrot.slane %v764, 4
      %v766 = vadd.f32 %v764, %v765
      %v767 = vrot.slane %v766, 2
      %v768 = vadd.f32 %v766, %v767
      %v769 = vrot.slane %v768, 1
      %v770 = vadd.f32 %v768, %v769
      %v771 = vsel %vm741, %v770, 0.0
      %v772 = vadd.f32 %v740, %v771
      %773 = vst.msk [vmem:[%s305] sm:$0xf] %vm515, %v772
      %s774 = smul.u32 8, %s19
      %p775 = scmp.lt.s32.totalorder %s774, 15
      %s776 = scalar_select %p775, %s774, 15
      %s777 = smul.addr %s776, 4
      %s778 = scalar_lea.vmem %s5, %s777
      %s779 = smul.u32 8, %s19
      %p780 = scmp.lt.s32.totalorder %s779, 15
      %s781 = scalar_select %p780, %s779, 15
      %s782 = smul.addr %s781, 4
      %s783 = scalar_lea.vmem %s6, %s782
      %p784 = scmp.lt.s32.totalorder %s19, 1
      %s785 = scalar_select %p784, %s19, 1
      %s786 = smul.addr %s785, 4
      %s787 = scalar_lea.vmem %s7, %s786
      // Predicated region
      $region41: #{wide_resnet_block_forward.4} parent=39 // pred_check
        %p788 = pneg %p147
      $region42: #{wide_resnet_block_forward.4} parent=39 // pred_check_branch
        %790 = sbr.rel (%p788) target = $region44
      $region43: #{wide_resnet_block_forward.4} parent=39 // pred_region
        %s791 = smul.u32 8, %s19
      $region44: #{wide_resnet_block_forward.4} parent=39 // pred_fallthru
        _
      // Predicated region
      $region45: #{wide_resnet_block_forward.4} parent=39 // pred_check
        %p792 = pneg %p173
      $region46: #{wide_resnet_block_forward.4} parent=39 // pred_check_branch
        %794 = sbr.rel (%p792) target = $region48
      $region47: #{wide_resnet_block_forward.4} parent=39 // pred_region
        %s795 = smul.u32 8, %s19
      $region48: #{wide_resnet_block_forward.4} parent=39 // pred_fallthru
        _
      // Predicated region
      $region49: #{wide_resnet_block_forward.4} parent=39 // pred_check
        %p796 = pneg %p199
      $region50: #{wide_resnet_block_forward.4} parent=39 // pred_check_branch
        %798 = sbr.rel (%p796) target = $region52
      $region51: #{wide_resnet_block_forward.4} parent=39 // pred_region
        _
      $region52: #{wide_resnet_block_forward.4} parent=39 // pred_fallthru
        _
    $region40: #{wide_resnet_block_forward.4} parent=5 // pred_fallthru
      _
    %p799 = scmp.le.s32.totalorder 2, %s14
    // Predicated region
    $region53: #{wide_resnet_block_forward.4} parent=5 // pred_check
      %p800 = pneg %p799
    $region54: #{wide_resnet_block_forward.4} parent=5 // pred_check_branch
      %802 = sbr.rel (%p800) target = $region56
    $region55: #{wide_resnet_block_forward.4} parent=5 // pred_region
      %s803 = ssub.s32 %s14, 2
      // Predicated region
      $region57: #{wide_resnet_block_forward.4} parent=55 // pred_check
        %p804 = pneg %p153
      $region58: #{wide_resnet_block_forward.4} parent=55 // pred_check_branch
        %806 = sbr.rel (%p804) target = $region60
      $region59: #{wide_resnet_block_forward.4} parent=55 // pred_region
        %s807 = smul.u32 8, %s20
        %p808 = scmp.lt.s32.totalorder %s807, 15
        %s809 = scalar_select %p808, %s807, 15
        %s810 = smul.addr %s809, 4
        %s811 = scalar_lea.vmem %s5, %s810
      $region60: #{wide_resnet_block_forward.4} parent=55 // pred_fallthru
        _
      // Predicated region
      $region61: #{wide_resnet_block_forward.4} parent=55 // pred_check
        %p812 = pneg %p179
      $region62: #{wide_resnet_block_forward.4} parent=55 // pred_check_branch
        %814 = sbr.rel (%p812) target = $region64
      $region63: #{wide_resnet_block_forward.4} parent=55 // pred_region
        %s815 = smul.u32 8, %s20
        %p816 = scmp.lt.s32.totalorder %s815, 15
        %s817 = scalar_select %p816, %s815, 15
        %s818 = smul.addr %s817, 4
        %s819 = scalar_lea.vmem %s6, %s818
      $region64: #{wide_resnet_block_forward.4} parent=55 // pred_fallthru
        _
      // Predicated region
      $region65: #{wide_resnet_block_forward.4} parent=55 // pred_check
        %p820 = pneg %p205
      $region66: #{wide_resnet_block_forward.4} parent=55 // pred_check_branch
        %822 = sbr.rel (%p820) target = $region68
      $region67: #{wide_resnet_block_forward.4} parent=55 // pred_region
        %p823 = scmp.lt.s32.totalorder %s20, 1
        %s824 = scalar_select %p823, %s20, 1
        %s825 = smul.addr %s824, 4
        %s826 = scalar_lea.vmem %s7, %s825
      $region68: #{wide_resnet_block_forward.4} parent=55 // pred_fallthru
        _
    $region56: #{wide_resnet_block_forward.4} parent=5 // pred_fallthru
      _
  $region6: #{wide_resnet_block_forward.4} parent=0 // loop_footer
    %s18 = sadd.s32 1, %s14
  $region7: #{wide_resnet_block_forward.4} parent=0 // loop_footer_branch
    %13 = sbr.rel target = $region3
  $region8: #{wide_resnet_block_forward.4} parent=0 // loop_exit
    _

// kernel: wide_resnet_block_forward.5
$region0: #{wide_resnet_block_forward.5}
  #allocation0 [shape = 'u32[]', space=smem, size = 0x4, offset = 0x4, fixed_abs, tag = 'smem constant byte address 0x4 - core index']
  #allocation1 [shape = 'u32[144,128]{1,0:T(1,128)}', space=vmem, size = 0x12000, scoped, tag = 'internal scratch']
  %s0 = inlined_call_operand.vmem [shape: bf16[128,72], index: 0, kind: input, shape index: {}]
  %s1 = inlined_call_operand.vmem [shape: bf16[128,8], index: 1, kind: input, shape index: {}]
  %s2 = inlined_call_operand.vmem [shape: bf16[72,8], index: 2, kind: input, shape index: {}]
  %s3 = inlined_call_operand.vmem [shape: f32[1,72], index: 3, kind: input, shape index: {}]
  %s4 = inlined_call_operand.vmem [shape: f32[1,72], index: 4, kind: input, shape index: {}]
  %s5 = inlined_call_operand.vmem [shape: f32[1,8], index: 5, kind: input, shape index: {}]
  %s6 = inlined_call_operand.vmem [shape: f32[1,8], index: 6, kind: input, shape index: {}]
  %s7 = inlined_call_operand.vmem [shape: f32[128,8], index: 7, kind: output, shape index: {}]
  %s8 = sld [smem:[#allocation0]]
  $region61: #{wide_resnet_block_forward.5} parent=0
    _
  %s10 = ssub.s32 1, %s8
  %s11 = scalar_select 0, %s10, %s8
  loop: start=0, step=1, limit=4
  $region2: #{wide_resnet_block_forward.5} parent=0 // loop_pre_header
    _
  $region3: #{wide_resnet_block_forward.5} parent=0 // loop_header
    %s13 = sphi 0, %s17
    %p14 = scmp.ge.s32.totalorder %s13, 4
    %s23 = sphi 0, %s25
    %s26 = sphi 0, %s23
    %s27 = sphi 0, %s26
    %s43 = sphi 0, %s27
    %s49 = sphi 0, %s51
    %s52 = sphi 0, %s49
    %s53 = sphi 0, %s52
    %s69 = sphi 0, %s53
    %s73 = sphi 0, %s73
    %s75 = sphi 0, %s73
    %s76 = sphi 0, %s75
    %s90 = sphi 0, %s76
    %s94 = sphi 0, %s94
    %s96 = sphi 0, %s94
    %s97 = sphi 0, %s96
    %s111 = sphi 0, %s97
    %s115 = sphi 0, %s115
    %s117 = sphi 0, %s115
    %s118 = sphi 0, %s117
    %s132 = sphi 0, %s118
    %s136 = sphi 0, %s136
    %s138 = sphi 0, %s136
    %s139 = sphi 0, %s138
    %s153 = sphi 0, %s139
    %s157 = sphi 0, %s157
    %s159 = sphi 0, %s157
    %s160 = sphi 0, %s159
    %s174 = sphi 0, %s160
    %s180 = sphi 0, %s182
    %s183 = sphi 0, %s180
    %s184 = sphi 0, %s183
    %s200 = sphi 0, %s184
  $region4: #{wide_resnet_block_forward.5} parent=0 // loop_header_branch
    %16 = sbr.rel (%p14) target = $region8
  $region5: #{wide_resnet_block_forward.5} parent=0 // loop_body
    %s18 = ssub.s32 %s13, 1
    %s19 = ssub.s32 %s13, 2
    %s20 = sadd.s32 %s13, 1
    %s21 = ssub.s32 %s13, %s20
    %p22 = scmp.eq.s32.totalorder %s21, 0
    %s24 = sadd.s32 %s23, 1
    %s25 = scalar_select %p22, %s23, %s24
    %p28 = pneg %p22
    %p29 = scmp.eq.s32.totalorder %s13, 1
    %p30 = por %p28, %p29
    %p31 = scmp.ne.s32.totalorder %s23, %s26
    %p32 = scmp.eq.s32.totalorder %s13, 0
    %p33 = por %p31, %p32
    %p34 = scmp.ne.s32.totalorder %s23, %s26
    %p35 = scmp.eq.s32.totalorder %s18, 1
    %p36 = por %p34, %p35
    %p37 = scmp.ne.s32.totalorder %s26, %s27
    %p38 = scmp.eq.s32.totalorder %s18, 0
    %p39 = por %p37, %p38
    %p40 = scmp.ne.s32.totalorder %s26, %s27
    %p41 = scmp.eq.s32.totalorder %s19, 1
    %p42 = por %p40, %p41
    %p44 = scmp.ne.s32.totalorder %s27, %s43
    %p45 = scmp.eq.s32.totalorder %s19, 0
    %p46 = por %p44, %p45
    %s47 = ssub.s32 %s13, %s20
    %p48 = scmp.eq.s32.totalorder %s47, 0
    %s50 = sadd.s32 %s49, 1
    %s51 = scalar_select %p48, %s49, %s50
    %p54 = pneg %p48
    %p55 = scmp.eq.s32.totalorder %s13, 1
    %p56 = por %p54, %p55
    %p57 = scmp.ne.s32.totalorder %s49, %s52
    %p58 = scmp.eq.s32.totalorder %s13, 0
    %p59 = por %p57, %p58
    %p60 = scmp.ne.s32.totalorder %s49, %s52
    %p61 = scmp.eq.s32.totalorder %s18, 1
    %p62 = por %p60, %p61
    %p63 = scmp.ne.s32.totalorder %s52, %s53
    %p64 = scmp.eq.s32.totalorder %s18, 0
    %p65 = por %p63, %p64
    %p66 = scmp.ne.s32.totalorder %s52, %s53
    %p67 = scmp.eq.s32.totalorder %s19, 1
    %p68 = por %p66, %p67
    %p70 = scmp.ne.s32.totalorder %s53, %s69
    %p71 = scmp.eq.s32.totalorder %s19, 0
    %p72 = por %p70, %p71
    %s74 = sadd.s32 %s73, 1
    %p77 = scmp.eq.s32.totalorder %s13, 1
    %p78 = scmp.ne.s32.totalorder %s73, %s75
    %p79 = scmp.eq.s32.totalorder %s13, 0
    %p80 = por %p78, %p79
    %p81 = scmp.ne.s32.totalorder %s73, %s75
    %p82 = scmp.eq.s32.totalorder %s18, 1
    %p83 = por %p81, %p82
    %p84 = scmp.ne.s32.totalorder %s75, %s76
    %p85 = scmp.eq.s32.totalorder %s18, 0
    %p86 = por %p84, %p85
    %p87 = scmp.ne.s32.totalorder %s75, %s76
    %p88 = scmp.eq.s32.totalorder %s19, 1
    %p89 = por %p87, %p88
    %p91 = scmp.ne.s32.totalorder %s76, %s90
    %p92 = scmp.eq.s32.totalorder %s19, 0
    %p93 = por %p91, %p92
    %s95 = sadd.s32 %s94, 1
    %p98 = scmp.eq.s32.totalorder %s13, 1
    %p99 = scmp.ne.s32.totalorder %s94, %s96
    %p100 = scmp.eq.s32.totalorder %s13, 0
    %p101 = por %p99, %p100
    %p102 = scmp.ne.s32.totalorder %s94, %s96
    %p103 = scmp.eq.s32.totalorder %s18, 1
    %p104 = por %p102, %p103
    %p105 = scmp.ne.s32.totalorder %s96, %s97
    %p106 = scmp.eq.s32.totalorder %s18, 0
    %p107 = por %p105, %p106
    %p108 = scmp.ne.s32.totalorder %s96, %s97
    %p109 = scmp.eq.s32.totalorder %s19, 1
    %p110 = por %p108, %p109
    %p112 = scmp.ne.s32.totalorder %s97, %s111
    %p113 = scmp.eq.s32.totalorder %s19, 0
    %p114 = por %p112, %p113
    %s116 = sadd.s32 %s115, 1
    %p119 = scmp.eq.s32.totalorder %s13, 1
    %p120 = scmp.ne.s32.totalorder %s115, %s117
    %p121 = scmp.eq.s32.totalorder %s13, 0
    %p122 = por %p120, %p121
    %p123 = scmp.ne.s32.totalorder %s115, %s117
    %p124 = scmp.eq.s32.totalorder %s18, 1
    %p125 = por %p123, %p124
    %p126 = scmp.ne.s32.totalorder %s117, %s118
    %p127 = scmp.eq.s32.totalorder %s18, 0
    %p128 = por %p126, %p127
    %p129 = scmp.ne.s32.totalorder %s117, %s118
    %p130 = scmp.eq.s32.totalorder %s19, 1
    %p131 = por %p129, %p130
    %p133 = scmp.ne.s32.totalorder %s118, %s132
    %p134 = scmp.eq.s32.totalorder %s19, 0
    %p135 = por %p133, %p134
    %s137 = sadd.s32 %s136, 1
    %p140 = scmp.eq.s32.totalorder %s13, 1
    %p141 = scmp.ne.s32.totalorder %s136, %s138
    %p142 = scmp.eq.s32.totalorder %s13, 0
    %p143 = por %p141, %p142
    %p144 = scmp.ne.s32.totalorder %s136, %s138
    %p145 = scmp.eq.s32.totalorder %s18, 1
    %p146 = por %p144, %p145
    %p147 = scmp.ne.s32.totalorder %s138, %s139
    %p148 = scmp.eq.s32.totalorder %s18, 0
    %p149 = por %p147, %p148
    %p150 = scmp.ne.s32.totalorder %s138, %s139
    %p151 = scmp.eq.s32.totalorder %s19, 1
    %p152 = por %p150, %p151
    %p154 = scmp.ne.s32.totalorder %s139, %s153
    %p155 = scmp.eq.s32.totalorder %s19, 0
    %p156 = por %p154, %p155
    %s158 = sadd.s32 %s157, 1
    %p161 = scmp.eq.s32.totalorder %s13, 1
    %p162 = scmp.ne.s32.totalorder %s157, %s159
    %p163 = scmp.eq.s32.totalorder %s13, 0
    %p164 = por %p162, %p163
    %p165 = scmp.ne.s32.totalorder %s157, %s159
    %p166 = scmp.eq.s32.totalorder %s18, 1
    %p167 = por %p165, %p166
    %p168 = scmp.ne.s32.totalorder %s159, %s160
    %p169 = scmp.eq.s32.totalorder %s18, 0
    %p170 = por %p168, %p169
    %p171 = scmp.ne.s32.totalorder %s159, %s160
    %p172 = scmp.eq.s32.totalorder %s19, 1
    %p173 = por %p171, %p172
    %p175 = scmp.ne.s32.totalorder %s160, %s174
    %p176 = scmp.eq.s32.totalorder %s19, 0
    %p177 = por %p175, %p176
    %s178 = ssub.s32 %s13, %s20
    %p179 = scmp.eq.s32.totalorder %s178, 0
    %s181 = sadd.s32 %s180, 1
    %s182 = scalar_select %p179, %s180, %s181
    %p185 = pneg %p179
    %p186 = scmp.eq.s32.totalorder %s13, 1
    %p187 = por %p185, %p186
    %p188 = scmp.ne.s32.totalorder %s180, %s183
    %p189 = scmp.eq.s32.totalorder %s13, 0
    %p190 = por %p188, %p189
    %p191 = scmp.ne.s32.totalorder %s180, %s183
    %p192 = scmp.eq.s32.totalorder %s18, 1
    %p193 = por %p191, %p192
    %p194 = scmp.ne.s32.totalorder %s183, %s184
    %p195 = scmp.eq.s32.totalorder %s18, 0
    %p196 = por %p194, %p195
    %p197 = scmp.ne.s32.totalorder %s183, %s184
    %p198 = scmp.eq.s32.totalorder %s19, 1
    %p199 = por %p197, %p198
    %p201 = scmp.ne.s32.totalorder %s184, %s200
    %p202 = scmp.eq.s32.totalorder %s19, 0
    %p203 = por %p201, %p202
    %p204 = scmp.le.s32.totalorder 1, %s13
    %p205 = scmp.lt.s32.totalorder %s13, 3
    %p206 = pnand %p204, %p205
    %p207 = pneg %p206
    // Predicated region
    $region9: #{wide_resnet_block_forward.5} parent=5 // pred_check
      _
    $region10: #{wide_resnet_block_forward.5} parent=5 // pred_check_branch
      %209 = sbr.rel (%p206) target = $region12
    $region11: #{wide_resnet_block_forward.5} parent=5 // pred_region
      %s210 = ssub.s32 %s13, 1
      // Predicated region
      $region13: #{wide_resnet_block_forward.5} parent=11 // pred_check
        %p211 = pneg %p86
      $region14: #{wide_resnet_block_forward.5} parent=11 // pred_check_branch
        %213 = sbr.rel (%p211) target = $region16
      $region15: #{wide_resnet_block_forward.5} parent=11 // pred_region
        _
      $region16: #{wide_resnet_block_forward.5} parent=11 // pred_fallthru
        _
      // Predicated region
      $region17: #{wide_resnet_block_forward.5} parent=11 // pred_check
        %p214 = pneg %p107
      $region18: #{wide_resnet_block_forward.5} parent=11 // pred_check_branch
        %216 = sbr.rel (%p214) target = $region20
      $region19: #{wide_resnet_block_forward.5} parent=11 // pred_region
        _
      $region20: #{wide_resnet_block_forward.5} parent=11 // pred_fallthru
        _
      // Predicated region
      $region21: #{wide_resnet_block_forward.5} parent=11 // pred_check
        %p217 = pneg %p128
      $region22: #{wide_resnet_block_forward.5} parent=11 // pred_check_branch
        %219 = sbr.rel (%p217) target = $region24
      $region23: #{wide_resnet_block_forward.5} parent=11 // pred_region
        _
      $region24: #{wide_resnet_block_forward.5} parent=11 // pred_fallthru
        _
      // Predicated region
      $region25: #{wide_resnet_block_forward.5} parent=11 // pred_check
        %p220 = pneg %p149
      $region26: #{wide_resnet_block_forward.5} parent=11 // pred_check_branch
        %222 = sbr.rel (%p220) target = $region28
      $region27: #{wide_resnet_block_forward.5} parent=11 // pred_region
        _
      $region28: #{wide_resnet_block_forward.5} parent=11 // pred_fallthru
        _
      // Predicated region
      $region29: #{wide_resnet_block_forward.5} parent=11 // pred_check
        %p223 = pneg %p170
      $region30: #{wide_resnet_block_forward.5} parent=11 // pred_check_branch
        %225 = sbr.rel (%p223) target = $region32
      $region31: #{wide_resnet_block_forward.5} parent=11 // pred_region
        _
      $region32: #{wide_resnet_block_forward.5} parent=11 // pred_fallthru
        _
    $region12: #{wide_resnet_block_forward.5} parent=5 // pred_fallthru
      _
    %p226 = scmp.lt.s32.totalorder %s13, 2
    // Predicated region
    $region33: #{wide_resnet_block_forward.5} parent=5 // pred_check
      %p227 = pneg %p226
    $region34: #{wide_resnet_block_forward.5} parent=5 // pred_check_branch
      %229 = sbr.rel (%p227) target = $region36
    $region35: #{wide_resnet_block_forward.5} parent=5 // pred_region
      // Predicated region
      $region37: #{wide_resnet_block_forward.5} parent=35 // pred_check
        %p230 = pneg %p33
      $region38: #{wide_resnet_block_forward.5} parent=35 // pred_check_branch
        %232 = sbr.rel (%p230) target = $region40
      $region39: #{wide_resnet_block_forward.5} parent=35 // pred_region
        %s233 = smul.u32 8, %s13
        %p234 = scmp.lt.s32.totalorder %s233, 15
        %s235 = scalar_select %p234, %s233, 15
        %s236 = smul.addr %s235, 4
        %s237 = scalar_lea.vmem %s0, %s236
        %s238 = smul.u32 8, %s13
      $region40: #{wide_resnet_block_forward.5} parent=35 // pred_fallthru
        _
      // Predicated region
      $region41: #{wide_resnet_block_forward.5} parent=35 // pred_check
        %p239 = pneg %p59
      $region42: #{wide_resnet_block_forward.5} parent=35 // pred_check_branch
        %241 = sbr.rel (%p239) target = $region44
      $region43: #{wide_resnet_block_forward.5} parent=35 // pred_region
        %s242 = smul.u32 8, %s13
        %p243 = scmp.lt.s32.totalorder %s242, 15
        %s244 = scalar_select %p243, %s242, 15
        %s245 = smul.addr %s244, 4
        %s246 = scalar_lea.vmem %s1, %s245
        %s247 = smul.u32 8, %s13
      $region44: #{wide_resnet_block_forward.5} parent=35 // pred_fallthru
        _
    $region36: #{wide_resnet_block_forward.5} parent=5 // pred_fallthru
      _
    %p248 = scmp.le.s32.totalorder 1, %s13
    %p249 = scmp.lt.s32.totalorder %s13, 3
    %p250 = pnand %p248, %p249
    %p251 = pneg %p250
    // Predicated region
    $region45: #{wide_resnet_block_forward.5} parent=5 // pred_check
      _
    $region46: #{wide_resnet_block_forward.5} parent=5 // pred_check_branch
      %253 = sbr.rel (%p250) target = $region48
    $region47: #{wide_resnet_block_forward.5} parent=5 // pred_region
      %s254 = ssub.s32 %s13, 1
      %s255 = smul.u32 8, %s18
      %p256 = scmp.lt.s32.totalorder %s255, 15
      %s257 = scalar_select %p256, %s255, 15
      %s258 = smul.addr %s257, 4
      %s259 = scalar_lea.vmem %s0, %s258
      %p260 = pneg %p39
      %p261 = pneg %p36
      %s262 = smul.u32 8, %s18
      %p263 = scmp.lt.s32.totalorder %s262, 15
      %s264 = scalar_select %p263, %s262, 15
      %s265 = smul.addr %s264, 4
      %s266 = scalar_lea.vmem %s1, %s265
      %p267 = pneg %p65
      %p268 = pneg %p62
      %p269 = pneg %p86
      %p270 = pneg %p83
      %p271 = pneg %p107
      %p272 = pneg %p104
      %p273 = pneg %p128
      %p274 = pneg %p125
      %p275 = pneg %p149
      %p276 = pneg %p146
      %p277 = pneg %p170
      %p278 = pneg %p167
      %p279 = pneg %p196
      %p280 = pneg %p193
      %s281 = smul.u32 8, %s18
      %p282 = scmp.lt.s32.totalorder %s281, 15
      %s283 = scalar_select %p282, %s281, 15
      %s284 = smul.addr %s283, 8
      %s285 = scalar_lea.vmem %s7, %s284
      %s286 = smul.u32 8, %s18
      %p287 = scmp.lt.s32.totalorder %s286, 15
      %s288 = scalar_select %p287, %s286, 15
      %s289 = smul.addr %s288, 4
      %s290 = scalar_lea.vmem %s0, %s289
      %s291 = smul.u32 8, %s18
      %s292 = smul.u32 8, %s18
      %p293 = scmp.lt.s32.totalorder %s292, 15
      %s294 = scalar_select %p293, %s292, 15
      %s295 = smul.addr %s294, 4
      %s296 = scalar_lea.vmem %s1, %s295
      %s297 = smul.u32 8, %s18
      %s298 = smul.u32 8, %s18
      %p299 = scmp.lt.s32.totalorder %s298, 15
      %s300 = scalar_select %p299, %s298, 15
      %s301 = smul.addr %s300, 8
      %s302 = scalar_lea.vmem %s7, %s301
      %s303 = smul.u32 8, %s18
      %v305 = vld [vmem:[%s290] sm:$0xf]
      %v306 = vld [vmem:[%s290 + $0x4] sm:$0xf]
      %v307 = vld [vmem:[%s290 + $0x8] sm:$0xf]
      %v308 = vld [vmem:[%s290 + $0xc] sm:$0xf]
      %v309 = vld [vmem:[%s290 + $0x10] sm:$0xf]
      %v310 = vld [vmem:[%s290 + $0x14] sm:$0xf]
      %v311 = vld [vmem:[%s290 + $0x18] sm:$0xf]
      %v312 = vld [vmem:[%s290 + $0x1c] sm:$0xf]
      %v313 = vunpack.c.l.bf16 %v305
      %v314 = vunpack.c.l.bf16 %v306
      %v315 = vunpack.c.l.bf16 %v307
      %v316 = vunpack.c.l.bf16 %v308
      %v317 = vunpack.c.l.bf16 %v309
      %v318 = vunpack.c.l.bf16 %v310
      %v319 = vunpack.c.l.bf16 %v311
      %v320 = vunpack.c.l.bf16 %v312
      %v321 = vld [vmem:[%s3] sm:$0x1]
      %v323 = vlaneseq
      %v324 = vshrl.u32 %v323, 7
      %v325 = vsub.s32 0, %v324
      %v326 = vrot.slane %v321, %v325
      %v328 = vmul.f32 %v313, %v326
      %v329 = vmul.f32 %v314, %v326
      %v330 = vmul.f32 %v315, %v326
      %v331 = vmul.f32 %v316, %v326
      %v332 = vmul.f32 %v317, %v326
      %v333 = vmul.f32 %v318, %v326
      %v334 = vmul.f32 %v319, %v326
      %v335 = vmul.f32 %v320, %v326
      %v336 = vld [vmem:[%s4] sm:$0x1]
      %v338 = vlaneseq
      %v339 = vshrl.u32 %v338, 7
      %v340 = vsub.s32 0, %v339
      %v341 = vrot.slane %v336, %v340
      %v343 = vadd.f32 %v328, %v341
      %v344 = vadd.f32 %v329, %v341
      %v345 = vadd.f32 %v330, %v341
      %v346 = vadd.f32 %v331, %v341
      %v347 = vadd.f32 %v332, %v341
      %v348 = vadd.f32 %v333, %v341
      %v349 = vadd.f32 %v334, %v341
      %v350 = vadd.f32 %v335, %v341
      %vm351 = vcmp.ge.f32.partialorder %v343, 0.0
      %vm352 = vcmp.ge.f32.partialorder %v344, 0.0
      %vm353 = vcmp.ge.f32.partialorder %v345, 0.0
      %vm354 = vcmp.ge.f32.partialorder %v346, 0.0
      %vm355 = vcmp.ge.f32.partialorder %v347, 0.0
      %vm356 = vcmp.ge.f32.partialorder %v348, 0.0
      %vm357 = vcmp.ge.f32.partialorder %v349, 0.0
      %vm358 = vcmp.ge.f32.partialorder %v350, 0.0
      %v359 = vmul.f32 %v343, 0.1
      %v360 = vmul.f32 %v344, 0.1
      %v361 = vmul.f32 %v345, 0.1
      %v362 = vmul.f32 %v346, 0.1
      %v363 = vmul.f32 %v347, 0.1
      %v364 = vmul.f32 %v348, 0.1
      %v365 = vmul.f32 %v349, 0.1
      %v366 = vmul.f32 %v350, 0.1
      %v367 = vsel %vm351, %v343, %v359
      %v368 = vsel %vm352, %v344, %v360
      %v369 = vsel %vm353, %v345, %v361
      %v370 = vsel %vm354, %v346, %v362
      %v371 = vsel %vm355, %v347, %v363
      %v372 = vsel %vm356, %v348, %v364
      %v373 = vsel %vm357, %v349, %v365
      %v374 = vsel %vm358, %v350, %v366
      %v375 = vpack.c.bf16 %v368, %v367
      %v376 = vpack.c.bf16 %v370, %v369
      %v377 = vpack.c.bf16 %v372, %v371
      %v378 = vpack.c.bf16 %v374, %v373
      %v379 = vld [vmem:[%s2] sm:$0xf]
      %v380 = vld [vmem:[%s2 + $0x4] sm:$0xf]
      %v381 = vld [vmem:[%s2 + $0x8] sm:$0xf]
      %v382 = vld [vmem:[%s2 + $0xc] sm:$0xf]
      %v383 = vld [vmem:[%s2 + $0x10] sm:$0xf]
      %v384 = vld [vmem:[%s2 + $0x14] sm:$0xf]
      %v385 = vld [vmem:[%s2 + $0x18] sm:$0xf]
      %v386 = vld [vmem:[%s2 + $0x1c] sm:$0xf]
      %v387 = vld [vmem:[%s2 + $0x20] sm:$0xf]
      %v388 = vld [vmem:[%s296] sm:$0xf]
      %v389 = vld [vmem:[%s296 + $0x4] sm:$0xf]
      %v390 = vld [vmem:[%s296 + $0x8] sm:$0xf]
      %v391 = vld [vmem:[%s296 + $0xc] sm:$0xf]
      %v392 = vld [vmem:[%s296 + $0x10] sm:$0xf]
      %v393 = vld [vmem:[%s296 + $0x14] sm:$0xf]
      %v394 = vld [vmem:[%s296 + $0x18] sm:$0xf]
      %v395 = vld [vmem:[%s296 + $0x1c] sm:$0xf]
      %v396 = vunpack.c.l.bf16 %v388
      %v397 = vunpack.c.l.bf16 %v389
      %v398 = vunpack.c.l.bf16 %v390
      %v399 = vunpack.c.l.bf16 %v391
      %v400 = vunpack.c.l.bf16 %v392
      %v401 = vunpack.c.l.bf16 %v393
      %v402 = vunpack.c.l.bf16 %v394
      %v403 = vunpack.c.l.bf16 %v395
      %v404 = vld [vmem:[%s5] sm:$0x1]
      %v406 = vlaneseq
      %v407 = vshrl.u32 %v406, 7
      %v408 = vsub.s32 0, %v407
      %v409 = vrot.slane %v404, %v408
      %v411 = vmul.f32 %v396, %v409
      %v412 = vmul.f32 %v397, %v409
      %v413 = vmul.f32 %v398, %v409
      %v414 = vmul.f32 %v399, %v409
      %v415 = vmul.f32 %v400, %v409
      %v416 = vmul.f32 %v401, %v409
      %v417 = vmul.f32 %v402, %v409
      %v418 = vmul.f32 %v403, %v409
      %v419 = vld [vmem:[%s6] sm:$0x1]
      %v421 = vlaneseq
      %v422 = vshrl.u32 %v421, 7
      %v423 = vsub.s32 0, %v422
      %v424 = vrot.slane %v419, %v423
      %v426 = vadd.f32 %v411, %v424
      %v427 = vadd.f32 %v412, %v424
      %v428 = vadd.f32 %v413, %v424
      %v429 = vadd.f32 %v414, %v424
      %v430 = vadd.f32 %v415, %v424
      %v431 = vadd.f32 %v416, %v424
      %v432 = vadd.f32 %v417, %v424
      %v433 = vadd.f32 %v418, %v424
      %v443 = vunpack.c.l.b16 %v379
      %v444 = vunpack.c.l.b16 %v380
      %v445 = vunpack.c.l.b16 %v381
      %v446 = vunpack.c.l.b16 %v382
      %v447 = vunpack.c.l.b16 %v383
      %v448 = vunpack.c.l.b16 %v384
      %v449 = vunpack.c.l.b16 %v385
      %v450 = vunpack.c.l.b16 %v386
      %v451 = vunpack.c.l.b16 %v387
      %v452 = vpack.c.b16 %v444, %v443
      %v453 = vpack.c.b16 %v446, %v445
      %v454 = vpack.c.b16 %v448, %v447
      %v455 = vpack.c.b16 %v450, %v449
      %v456 = vpack.c.b16 %v451, %v451
      %vm461 = vcmask 588800
      %v463 = vsel %vm461, %v375, 0
      %v466 = vsel %vm461, %v376, 0
      %v469 = vsel %vm461, %v377, 0
      %v472 = vsel %vm461, %v378, 0
      %vm474 = vcmask 1043456
      %v476 = vsel %vm474, %v456, 0
      %478 = vmatprep.subr.bf16.mxu0 0
      %479 = vmatpush1.bf16.msra.mxu0 %v452
      %480 = vmatprep.subr.bf16.mxu0 0
      %481 = vmatpush1.bf16.msra.mxu0 %v453
      %482 = vmatprep.subr.bf16.mxu0 0
      %483 = vmatpush1.bf16.msra.mxu0 %v454
      %484 = vmatprep.subr.bf16.mxu0 0
      %485 = vmatpush1.bf16.msra.mxu0 %v455
      %486 = vmatprep.subr.bf16.mxu0 0
      %487 = vmatpush1.bf16.msra.mxu0 %v476
      %488 = vmatprep.subr.bf16.mxu0 0
      %489 = vmatpush1.bf16.msra.mxu0 0
      %490 = vmatprep.subr.bf16.mxu0 0
      %491 = vmatpush1.bf16.msra.mxu0 0
      %492 = vmatprep.subr.bf16.mxu0 0
      %493 = vmatpush1.bf16.msra.mxu0 0
      %494 = vmatprep.subr.bf16.mxu0 0
      %495 = vmatpush1.bf16.msra.mxu0 0
      %496 = vmatprep.subr.bf16.mxu0 0
      %497 = vmatpush1.bf16.msra.mxu0 0
      %498 = vmatprep.subr.bf16.mxu0 0
      %499 = vmatpush1.bf16.msra.mxu0 0
      %500 = vmatprep.subr.bf16.mxu0 0
      %501 = vmatpush1.bf16.msra.mxu0 0
      %502 = vmatprep.subr.bf16.mxu0 0
      %503 = vmatpush1.bf16.msra.mxu0 0
      %504 = vmatprep.subr.bf16.mxu0 0
      %505 = vmatpush1.bf16.msra.mxu0 0
      %506 = vmatprep.subr.bf16.mxu0 0
      %507 = vmatpush1.bf16.msra.mxu0 0
      %508 = vmatprep.subr.bf16.mxu0 0
      %509 = vmatpush1.bf16.msra.mxu0 0
      %510 = vmatprep.mubr.bf16.mxu0 0
      %511 = vmatmul.mubr.bf16.gmra.mrb[0].mxu0 %v463
      %v512 = vpop.f32.mrb[0].mxu0
      %v513 = vadd.f32 %v426, %v512
      %v514 = vpop.f32.mrb[0].mxu0
      %v515 = vpop.f32.mrb[0].mxu0
      %v516 = vadd.f32 %v427, %v515
      %v517 = vpop.f32.mrb[0].mxu0
      %518 = vmatprep.mubr.bf16.mxu0 0
      %519 = vmatmul.mubr.bf16.gmra.mrb[0].mxu0 %v466
      %v520 = vpop.f32.mrb[0].mxu0
      %v521 = vadd.f32 %v428, %v520
      %v522 = vpop.f32.mrb[0].mxu0
      %v523 = vpop.f32.mrb[0].mxu0
      %v524 = vadd.f32 %v429, %v523
      %v525 = vpop.f32.mrb[0].mxu0
      %526 = vmatprep.mubr.bf16.mxu0 0
      %527 = vmatmul.mubr.bf16.gmra.mrb[0].mxu0 %v469
      %v528 = vpop.f32.mrb[0].mxu0
      %v529 = vadd.f32 %v430, %v528
      %v530 = vpop.f32.mrb[0].mxu0
      %v531 = vpop.f32.mrb[0].mxu0
      %v532 = vadd.f32 %v431, %v531
      %v533 = vpop.f32.mrb[0].mxu0
      %534 = vmatprep.mubr.bf16.mxu0 0
      %535 = vmatmul.mubr.bf16.gmra.mrb[0].mxu0 %v472
      %v536 = vpop.f32.mrb[0].mxu0
      %v537 = vadd.f32 %v432, %v536
      %v538 = vpop.f32.mrb[0].mxu0
      %v539 = vpop.f32.mrb[0].mxu0
      %v540 = vadd.f32 %v433, %v539
      %v541 = vpop.f32.mrb[0].mxu0
      %542 = vdwg.mxu0
      %vm543 = vcmask 64512
      %544 = vst.msk [vmem:[%s302] sm:$0xff] %vm543, %v513
      %545 = vst.msk [vmem:[%s302 + $0x8] sm:$0xff] %vm543, %v516
      %546 = vst.msk [vmem:[%s302 + $0x10] sm:$0xff] %vm543, %v521
      %547 = vst.msk [vmem:[%s302 + $0x18] sm:$0xff] %vm543, %v524
      %548 = vst.msk [vmem:[%s302 + $0x20] sm:$0xff] %vm543, %v529
      %549 = vst.msk [vmem:[%s302 + $0x28] sm:$0xff] %vm543, %v532
      %550 = vst.msk [vmem:[%s302 + $0x30] sm:$0xff] %vm543, %v537
      %551 = vst.msk [vmem:[%s302 + $0x38] sm:$0xff] %vm543, %v540
      %s552 = smul.u32 8, %s18
      %p553 = scmp.lt.s32.totalorder %s552, 15
      %s554 = scalar_select %p553, %s552, 15
      %s555 = smul.addr %s554, 8
      %s556 = scalar_lea.vmem %s7, %s555
      // Predicated region
      $region49: #{wide_resnet_block_forward.5} parent=47 // pred_check
        %p557 = pneg %p193
      $region50: #{wide_resnet_block_forward.5} parent=47 // pred_check_branch
        %559 = sbr.rel (%p557) target = $region52
      $region51: #{wide_resnet_block_forward.5} parent=47 // pred_region
        %s560 = smul.u32 8, %s18
      $region52: #{wide_resnet_block_forward.5} parent=47 // pred_fallthru
        _
    $region48: #{wide_resnet_block_forward.5} parent=5 // pred_fallthru
      _
    %p561 = scmp.le.s32.totalorder 2, %s13
    // Predicated region
    $region53: #{wide_resnet_block_forward.5} parent=5 // pred_check
      %p562 = pneg %p561
    $region54: #{wide_resnet_block_forward.5} parent=5 // pred_check_branch
      %564 = sbr.rel (%p562) target = $region56
    $region55: #{wide_resnet_block_forward.5} parent=5 // pred_region
      %s565 = ssub.s32 %s13, 2
      // Predicated region
      $region57: #{wide_resnet_block_forward.5} parent=55 // pred_check
        %p566 = pneg %p199
      $region58: #{wide_resnet_block_forward.5} parent=55 // pred_check_branch
        %568 = sbr.rel (%p566) target = $region60
      $region59: #{wide_resnet_block_forward.5} parent=55 // pred_region
        %s569 = smul.u32 8, %s19
        %p570 = scmp.lt.s32.totalorder %s569, 15
        %s571 = scalar_select %p570, %s569, 15
        %s572 = smul.addr %s571, 8
        %s573 = scalar_lea.vmem %s7, %s572
      $region60: #{wide_resnet_block_forward.5} parent=55 // pred_fallthru
        _
    $region56: #{wide_resnet_block_forward.5} parent=5 // pred_fallthru
      _
  $region6: #{wide_resnet_block_forward.5} parent=0 // loop_footer
    %s17 = sadd.s32 1, %s13
  $region7: #{wide_resnet_block_forward.5} parent=0 // loop_footer_branch
    %12 = sbr.rel target = $region3
  $region8: #{wide_resnet_block_forward.5} parent=0 // loop_exit
    _

</llo_original>
